<compile_context>
chip_gen: v6e
topology: v6e:2x2x1
jax: 0.10.0
libtpu: 0.0.40
codegen_flags: <defaults>
</compile_context>

<pallas_src>
import jax
import jax.numpy as jnp
from jax.experimental import pallas as pl
from jax.experimental.pallas import tpu as pltpu

# ----------------------------- config (small, consistent with the module) ----
N_NODES = 16          # number of graph nodes
HIDDEN = 32           # num_hidden
FFN_DIM = 16          # ffn_dim
EDGE_DIM = 8          # edge_dim
NUM_ETYPES = 3        # num_etypes
NUM_NTYPES = 3        # num_ntypes
NUM_LAYERS = 2        # num_layers  (kernel below hard-wires 3 TALayers)
DIM_LAYERS = 1        # dim_layers  (kernel below hard-wires 1 DALayer)
HEADS = [2, 2, 1]     # heads (len == num_layers + 1)
NEG_SLOPE = 0.2       # negative_slope
ALPHA = 0.05          # alpha (residual attention mixing)


def _elu(v):
    # elu(x) = x if x > 0 else exp(x) - 1   (clamp exp arg to avoid inf branch)
    return jnp.where(v > 0, v, jnp.exp(jnp.minimum(v, 0.0)) - 1.0)


# ----------------------------- the fused kernel -------------------------------
def _hetcan_fused_kernel(
    # VMEM inputs
    x_ref, adj_ref, et_ref, nt_ref, ntype_all_ref,
    w0_ref, al0_ref, ar0_ref,
    w1_ref, al1_ref, ar1_ref,
    w2_ref, al2_ref, ar2_ref,
    daffn_ref, fin_ref,
    # SMEM inputs (tiny scalar tables)
    ea0_ref, ea1_ref, ea2_ref, das_ref,
    # output
    out_ref,
):
    n = x_ref.shape[0]
    adj = adj_ref[...]            # (N, N) f32, [dst, src]
    et = et_ref[...]              # (N, N) int32 edge types
    nt = nt_ref[...]              # (N, 1) int32 node types

    # --- hoisted once, reused by every TALayer / head (JAX won't CSE these)
    edge_mask = adj > 0
    etype_masks = [et == t for t in range(NUM_ETYPES)]

    # --- node-type embedding -> linear (precomputed table) -> gather -> gate
    ntype_all = ntype_all_ref[...]                                   # (T, H)
    iota_t = jax.lax.broadcasted_iota(jnp.int32, (n, NUM_NTYPES), 1)
    onehot = (nt == iota_t).astype(jnp.float32)                      # (N, T)
    ntype_feat = jnp.dot(onehot, ntype_all,
                         preferred_element_type=jnp.float32)         # (N, H)
    h0 = x_ref[...] * ntype_feat

    def ta_layer(h_chunks, w_ref, al_ref, ar_ref, ea_ref, heads,
                 has_res, res_prev, act):
        """SimpleHGN-style TALayer on the dense (dst, src) adjacency.

        h_chunks: list of (N, HIDDEN) chunks (== concat along feature dim).
        Returns per-head output chunks and per-head attention matrices.
        """
        w = w_ref[...]                          # (len(h_chunks)*H, [fc | res])
        al = al_ref[...]                        # (heads, H)
        ar = ar_ref[...]                        # (heads, H)
        fdim = heads * HIDDEN
        # concat(h_chunks) @ [w_fc | w_res]  computed chunk-wise (no concat op)
        big = None
        for c, hc in enumerate(h_chunks):
            part = jnp.dot(hc, w[c * HIDDEN:(c + 1) * HIDDEN, :],
                           preferred_element_type=jnp.float32)
            big = part if big is None else big + part
        out_chunks, attns = [], []
        for hh in range(heads):
            feat_h = big[:, hh * HIDDEN:(hh + 1) * HIDDEN]           # (N, H)
            al_h = al[hh:hh + 1, :]                                  # (1, H)
            ar_h = ar[hh:hh + 1, :]                                  # (1, H)
            # src term broadcast over dst rows, dst term broadcast over cols
            el_row = jnp.dot(al_h, feat_h.T,
                             preferred_element_type=jnp.float32)     # (1, N)
            er_col = jnp.sum(feat_h * ar_h, axis=-1, keepdims=True)  # (N, 1)
            # edge-type term: eee[i, j] = etype_att[et[i, j], hh]
            eee = jnp.zeros_like(adj)
            for t in range(NUM_ETYPES):
                eee = jnp.where(etype_masks[t], ea_ref[hh * NUM_ETYPES + t], eee)
            logits = el_row + er_col + eee
            logits = jnp.where(logits >= 0, logits, NEG_SLOPE * logits)  # leaky relu
            # mask non-edges; every node has a self-loop so each row has >=1 edge
            logits = jnp.where(edge_mask, logits, -1e9)
            m = jnp.max(logits, axis=-1, keepdims=True)
            p = jnp.exp(logits - m)
            attn = p * pl.reciprocal(jnp.sum(p, axis=-1, keepdims=True),
                                     approx=True)                    # edge softmax
            if res_prev is not None:                                 # residual attn
                attn = attn * (1.0 - ALPHA) + res_prev[hh] * ALPHA
            o_h = jnp.dot(attn, feat_h, preferred_element_type=jnp.float32)
            if has_res:                                              # fc residual
                o_h = o_h + big[:, fdim + hh * HIDDEN:fdim + (hh + 1) * HIDDEN]
            if act:
                o_h = _elu(o_h)
            out_chunks.append(o_h)
            attns.append(attn)
        return out_chunks, attns

    # --- type encoder (stacked TALayers); res_attn never leaves the kernel
    c0, attn0 = ta_layer([h0], w0_ref, al0_ref, ar0_ref, ea0_ref, HEADS[0],
                         has_res=False, res_prev=None, act=True)
    c1, _ = ta_layer(c0, w1_ref, al1_ref, ar1_ref, ea1_ref, HEADS[1],
                     has_res=True, res_prev=attn0, act=True)
    c2, _ = ta_layer(c1, w2_ref, al2_ref, ar2_ref, ea2_ref, HEADS[2],
                     has_res=True, res_prev=None, act=False)
    h_feat = c2[0]                                                   # (N, H)

    # --- dimension encoder (DALayer with hidden_dim=1, num_heads=1)
    # TODO(synk): DALayer source not provided; Graphormer-style pre-LN encoder
    # layer assumed.  That layer collapses EXACTLY for hidden_dim=1:
    #   LayerNorm over a size-1 axis is its bias (x - mean(x) == 0), so
    #   Q/K/V are position-independent scalars, every softmax row is uniform,
    #   the attention output equals V, and the FFN input is the LN2 bias.
    # => the whole block is x + C with a parameter-only scalar C.
    ln1_b = das_ref[1]
    ln2_b = das_ref[3]
    wv = das_ref[8]; bv = das_ref[9]
    wo = das_ref[10]; bo = das_ref[11]
    b2 = das_ref[12]
    attn_const = (ln1_b * wv + bv) * wo + bo                         # scalar
    w1r = daffn_ref[0:1, :]                                          # (1, FFN)
    b1r = daffn_ref[1:2, :]
    w2r = daffn_ref[2:3, :]
    ffn_row = jnp.maximum(ln2_b * w1r + b1r, 0.0)                    # (1, FFN)
    ffn_const = jnp.sum(ffn_row * w2r, axis=-1, keepdims=True)       # (1, 1)
    da_const = ffn_const + (attn_const + b2)                         # (1, 1)
    h_dim = h_feat * ntype_feat + da_const                           # (N, H)

    # --- F.normalize both branches + final projection (no bias), fused
    hf = h_feat * jax.lax.rsqrt(
        jnp.maximum(jnp.sum(h_feat * h_feat, axis=-1, keepdims=True), 1e-24))
    hd = h_dim * jax.lax.rsqrt(
        jnp.maximum(jnp.sum(h_dim * h_dim, axis=-1, keepdims=True), 1e-24))
    fw = fin_ref[...]                                                # (2H, H)
    out_ref[...] = (
        jnp.dot(hf, fw[:HIDDEN, :], preferred_element_type=jnp.float32) +
        jnp.dot(hd, fw[HIDDEN:, :], preferred_element_type=jnp.float32))


# ----------------------------- wrapper ----------------------------------------
@jax.jit
def hetcan_forward(params, x, adj, etype_mat, node_type):
    n = x.shape[0]

    # Tiny parameter-only preprocessing (pure XLA, negligible): merged
    # [w_fc | w_res] weights and the per-(head, etype) attention scalars.
    def prep_ta(lp, heads, residual):
        w = lp["w_fc"]
        if residual:
            w = jnp.concatenate([lp["w_fc"], lp["w_res"]], axis=1)
        ee_proj = jnp.dot(lp["edge_emb"], lp["w_e"]).reshape(
            NUM_ETYPES, heads, EDGE_DIM)
        etype_att = jnp.sum(ee_proj * lp["attn_e"][None], axis=-1)   # (E_t, heads)
        ea_flat = jnp.transpose(etype_att).reshape(heads * NUM_ETYPES)
        return w, lp["attn_l"], lp["attn_r"], ea_flat

    w0, al0, ar0, ea0 = prep_ta(params["ta"][0], HEADS[0], False)
    w1, al1, ar1, ea1 = prep_ta(params["ta"][1], HEADS[1], True)
    w2, al2, ar2, ea2 = prep_ta(params["ta"][2], HEADS[2], True)

    # Embedding(arange(T)) -> Linear(no bias): a parameter-only (T, H) table.
    ntype_all = jnp.dot(params["ntype_emb"], params["fc_nodetype"])

    dap = params["da"][0]
    da_scalars = jnp.concatenate([
        dap["ln1_g"], dap["ln1_b"], dap["ln2_g"], dap["ln2_b"],
        dap["wq"].reshape(1), dap["bq"], dap["wk"].reshape(1), dap["bk"],
        dap["wv"].reshape(1), dap["bv"], dap["wo"].reshape(1), dap["bo"],
        dap["b2"], jnp.zeros((3,), jnp.float32)])                    # (16,)
    da_ffn = jnp.stack([dap["w1"][0], dap["b1"], dap["w2"][:, 0]], axis=0)

    nt_col = node_type.reshape(n, 1).astype(jnp.int32)

    vmem_specs = [pl.BlockSpec(memory_space=pltpu.MemorySpace.VMEM)
                  for _ in range(16)]
    smem_specs = [pl.BlockSpec(memory_space=pltpu.MemorySpace.SMEM)
                  for _ in range(4)]

    return pl.pallas_call(
        _hetcan_fused_kernel,
        out_shape=jax.ShapeDtypeStruct((n, HIDDEN), jnp.float32),
        in_specs=vmem_specs + smem_specs,
        out_specs=pl.BlockSpec(memory_space=pltpu.MemorySpace.VMEM),
    )(x, adj, etype_mat, nt_col, ntype_all,
      w0, al0, ar0, w1, al1, ar1, w2, al2, ar2,
      da_ffn, params["final_proj"],
      ea0, ea1, ea2, da_scalars)


# ----------------------------- parameters & inputs ----------------------------
def make_params(key):
    keys = iter(jax.random.split(key, 128))

    def nrm(shape, scale=0.2):
        return jax.random.normal(next(keys), shape, jnp.float32) * scale

    p = {
        "ntype_emb": nrm((NUM_NTYPES, HIDDEN)),
        "fc_nodetype": nrm((HIDDEN, HIDDEN)),
        "final_proj": nrm((2 * HIDDEN, HIDDEN)),
    }

    ta = []
    in_dims = [HIDDEN, HIDDEN * HEADS[0], HIDDEN * HEADS[1]]
    residuals = [False, True, True]
    for l in range(NUM_LAYERS + 1):
        heads = HEADS[l]
        layer = {
            "w_fc": nrm((in_dims[l], heads * HIDDEN)),
            "attn_l": nrm((heads, HIDDEN)),
            "attn_r": nrm((heads, HIDDEN)),
            "edge_emb": nrm((NUM_ETYPES, EDGE_DIM)),
            "w_e": nrm((EDGE_DIM, heads * EDGE_DIM)),
            "attn_e": nrm((heads, EDGE_DIM)),
        }
        if residuals[l]:
            layer["w_res"] = nrm((in_dims[l], heads * HIDDEN))
        ta.append(layer)
    p["ta"] = ta

    da = []
    for _ in range(DIM_LAYERS):
        da.append({
            "ln1_g": jnp.ones((1,), jnp.float32), "ln1_b": nrm((1,)),
            "ln2_g": jnp.ones((1,), jnp.float32), "ln2_b": nrm((1,)),
            "wq": nrm((1, 1)), "bq": nrm((1,)),
            "wk": nrm((1, 1)), "bk": nrm((1,)),
            "wv": nrm((1, 1)), "bv": nrm((1,)),
            "wo": nrm((1, 1)), "bo": nrm((1,)),
            "w1": nrm((1, FFN_DIM)), "b1": nrm((FFN_DIM,)),
            "w2": nrm((FFN_DIM, 1)), "b2": nrm((1,)),
        })
    p["da"] = da
    return p


def make_graph(n):
    adj = [[0.0] * n for _ in range(n)]
    etype = [[0] * n for _ in range(n)]
    for i in range(n):
        adj[i][i] = 1.0;               etype[i][i] = 0            # self-loop
        adj[i][(i - 1) % n] = 1.0;     etype[i][(i - 1) % n] = 1  # ring edge
        adj[i][(i + 3) % n] = 1.0;     etype[i][(i + 3) % n] = 2  # skip edge
    return (jnp.array(adj, jnp.float32), jnp.array(etype, jnp.int32))


if __name__ == "__main__":
    key = jax.random.PRNGKey(0)
    k_param, k_x = jax.random.split(key)

    params = make_params(k_param)
    x = jax.random.normal(k_x, (N_NODES, HIDDEN), jnp.float32)
    adj, etype_mat = make_graph(N_NODES)
    node_type = jnp.array([i % NUM_NTYPES for i in range(N_NODES)], jnp.int32)

    out = hetcan_forward(params, x, adj, etype_mat, node_type)
    out = jax.block_until_ready(out)
    assert out.shape == (N_NODES, HIDDEN)
    assert bool(jnp.all(jnp.isfinite(out)))
    print("KERNEL_OK")
</pallas_src>

<mosaic_0001>
module attributes {stable_mosaic.version = 11 : i64} {
  func.func @_hetcan_fused_kernel(%arg0: memref<16x32xf32, #tpu.memory_space<vmem>>, %arg1: memref<16x16xf32, #tpu.memory_space<vmem>>, %arg2: memref<16x16xi32, #tpu.memory_space<vmem>>, %arg3: memref<16x1xi32, #tpu.memory_space<vmem>>, %arg4: memref<3x32xf32, #tpu.memory_space<vmem>>, %arg5: memref<32x64xf32, #tpu.memory_space<vmem>>, %arg6: memref<2x32xf32, #tpu.memory_space<vmem>>, %arg7: memref<2x32xf32, #tpu.memory_space<vmem>>, %arg8: memref<64x128xf32, #tpu.memory_space<vmem>>, %arg9: memref<2x32xf32, #tpu.memory_space<vmem>>, %arg10: memref<2x32xf32, #tpu.memory_space<vmem>>, %arg11: memref<64x64xf32, #tpu.memory_space<vmem>>, %arg12: memref<1x32xf32, #tpu.memory_space<vmem>>, %arg13: memref<1x32xf32, #tpu.memory_space<vmem>>, %arg14: memref<3x16xf32, #tpu.memory_space<vmem>>, %arg15: memref<64x32xf32, #tpu.memory_space<vmem>>, %arg16: memref<6xf32, #tpu.memory_space<smem>>, %arg17: memref<6xf32, #tpu.memory_space<smem>>, %arg18: memref<3xf32, #tpu.memory_space<smem>>, %arg19: memref<16xf32, #tpu.memory_space<smem>>, %arg20: memref<16x32xf32, #tpu.memory_space<vmem>>) attributes {dimension_semantics = [], scalar_prefetch = 0 : i64, scratch_operands = 0 : i64, tpu.core_type = #tpu.core_type<tc>} {
    %c0 = arith.constant 0 : index
    %c0_0 = arith.constant 0 : index
    %0 = vector.load %arg1[%c0, %c0_0] : memref<16x16xf32, #tpu.memory_space<vmem>>, vector<16x16xf32>
    %c0_1 = arith.constant 0 : index
    %c0_2 = arith.constant 0 : index
    %1 = vector.load %arg2[%c0_1, %c0_2] : memref<16x16xi32, #tpu.memory_space<vmem>>, vector<16x16xi32>
    %c0_3 = arith.constant 0 : index
    %c0_4 = arith.constant 0 : index
    %2 = vector.load %arg3[%c0_3, %c0_4] : memref<16x1xi32, #tpu.memory_space<vmem>>, vector<16x1xi32>
    %cst = arith.constant 0.000000e+00 : f32
    %3 = vector.broadcast %cst : f32 to vector<16x16xf32>
    %4 = arith.cmpf ogt, %0, %3 : vector<16x16xf32>
    %c0_i32 = arith.constant 0 : i32
    %5 = vector.broadcast %c0_i32 : i32 to vector<16x16xi32>
    %6 = arith.cmpi eq, %1, %5 : vector<16x16xi32>
    %c1_i32 = arith.constant 1 : i32
    %7 = vector.broadcast %c1_i32 : i32 to vector<16x16xi32>
    %8 = arith.cmpi eq, %1, %7 : vector<16x16xi32>
    %c2_i32 = arith.constant 2 : i32
    %9 = vector.broadcast %c2_i32 : i32 to vector<16x16xi32>
    %10 = arith.cmpi eq, %1, %9 : vector<16x16xi32>
    %c0_5 = arith.constant 0 : index
    %c0_6 = arith.constant 0 : index
    %11 = vector.load %arg4[%c0_5, %c0_6] : memref<3x32xf32, #tpu.memory_space<vmem>>, vector<3x32xf32>
    %12 = tpu.iota {dimensions = array<i32: 1>} : vector<16x3xi32>
    %13 = vector.broadcast %2 : vector<16x1xi32> to vector<16x3xi32>
    %14 = arith.cmpi eq, %13, %12 : vector<16x3xi32>
    %15 = arith.extui %14 : vector<16x3xi1> to vector<16x3xi32>
    %16 = arith.sitofp %15 : vector<16x3xi32> to vector<16x3xf32>
    %cst_7 = arith.constant dense<0.000000e+00> : vector<16x32xf32>
    %17 = tpu.matmul %16, %11, %cst_7 {dimension_numbers = #tpu.dot_dimension_numbers<[1], [0], [0], [1], [0, 0, 1, 1], [], []>} : vector<16x3xf32>, vector<3x32xf32>, vector<16x32xf32> -> vector<16x32xf32>
    %c0_8 = arith.constant 0 : index
    %c0_9 = arith.constant 0 : index
    %18 = vector.load %arg0[%c0_8, %c0_9] : memref<16x32xf32, #tpu.memory_space<vmem>>, vector<16x32xf32>
    %19 = arith.mulf %18, %17 : vector<16x32xf32>
    %c0_10 = arith.constant 0 : index
    %c0_11 = arith.constant 0 : index
    %20 = vector.load %arg5[%c0_10, %c0_11] : memref<32x64xf32, #tpu.memory_space<vmem>>, vector<32x64xf32>
    %c0_12 = arith.constant 0 : index
    %c0_13 = arith.constant 0 : index
    %21 = vector.load %arg6[%c0_12, %c0_13] : memref<2x32xf32, #tpu.memory_space<vmem>>, vector<2x32xf32>
    %c0_14 = arith.constant 0 : index
    %c0_15 = arith.constant 0 : index
    %22 = vector.load %arg7[%c0_14, %c0_15] : memref<2x32xf32, #tpu.memory_space<vmem>>, vector<2x32xf32>
    %cst_16 = arith.constant dense<0.000000e+00> : vector<16x64xf32>
    %23 = tpu.matmul %19, %20, %cst_16 {dimension_numbers = #tpu.dot_dimension_numbers<[1], [0], [0], [1], [0, 0, 1, 1], [], []>} : vector<16x32xf32>, vector<32x64xf32>, vector<16x64xf32> -> vector<16x64xf32>
    %24 = vector.extract_strided_slice %23 {offsets = [0, 0], sizes = [16, 32], strides = [1, 1]} : vector<16x64xf32> to vector<16x32xf32>
    %25 = vector.extract_strided_slice %21 {offsets = [0, 0], sizes = [1, 32], strides = [1, 1]} : vector<2x32xf32> to vector<1x32xf32>
    %26 = vector.extract_strided_slice %22 {offsets = [0, 0], sizes = [1, 32], strides = [1, 1]} : vector<2x32xf32> to vector<1x32xf32>
    %27 = tpu.transpose %24, [1, 0] : vector<16x32xf32> -> vector<32x16xf32>
    %cst_17 = arith.constant dense<0.000000e+00> : vector<1x16xf32>
    %28 = tpu.matmul %25, %27, %cst_17 {dimension_numbers = #tpu.dot_dimension_numbers<[1], [0], [0], [1], [0, 0, 1, 1], [], []>} : vector<1x32xf32>, vector<32x16xf32>, vector<1x16xf32> -> vector<1x16xf32>
    %29 = vector.broadcast %26 : vector<1x32xf32> to vector<16x32xf32>
    %30 = arith.mulf %24, %29 : vector<16x32xf32>
    %cst_18 = arith.constant dense<0.000000e+00> : vector<16xf32>
    %31 = vector.multi_reduction <add>, %30, %cst_18 [1] : vector<16x32xf32> to vector<16xf32>
    %32 = vector.shape_cast %31 : vector<16xf32> to vector<16x1xf32>
    %cst_19 = arith.constant 0.000000e+00 : f32
    %33 = vector.broadcast %cst_19 : f32 to vector<16x16xf32>
    %c0_20 = arith.constant 0 : index
    %34 = memref.load %arg16[%c0_20] : memref<6xf32, #tpu.memory_space<smem>>
    %35 = vector.broadcast %34 : f32 to vector<16x16xf32>
    %36 = arith.select %6, %35, %33 : vector<16x16xi1>, vector<16x16xf32>
    %c1 = arith.constant 1 : index
    %37 = memref.load %arg16[%c1] : memref<6xf32, #tpu.memory_space<smem>>
    %38 = vector.broadcast %37 : f32 to vector<16x16xf32>
    %39 = arith.select %8, %38, %36 : vector<16x16xi1>, vector<16x16xf32>
    %c2 = arith.constant 2 : index
    %40 = memref.load %arg16[%c2] : memref<6xf32, #tpu.memory_space<smem>>
    %41 = vector.broadcast %40 : f32 to vector<16x16xf32>
    %42 = arith.select %10, %41, %39 : vector<16x16xi1>, vector<16x16xf32>
    %43 = vector.broadcast %28 : vector<1x16xf32> to vector<16x16xf32>
    %44 = vector.broadcast %32 : vector<16x1xf32> to vector<16x16xf32>
    %45 = arith.addf %43, %44 : vector<16x16xf32>
    %46 = arith.addf %45, %42 : vector<16x16xf32>
    %cst_21 = arith.constant 0.000000e+00 : f32
    %47 = vector.broadcast %cst_21 : f32 to vector<16x16xf32>
    %48 = arith.cmpf oge, %46, %47 : vector<16x16xf32>
    %cst_22 = arith.constant 2.000000e-01 : f32
    %49 = vector.broadcast %cst_22 : f32 to vector<16x16xf32>
    %50 = arith.mulf %49, %46 : vector<16x16xf32>
    %51 = arith.select %48, %46, %50 : vector<16x16xi1>, vector<16x16xf32>
    %cst_23 = arith.constant -1.000000e+09 : f32
    %52 = vector.broadcast %cst_23 : f32 to vector<16x16xf32>
    %53 = arith.select %4, %51, %52 : vector<16x16xi1>, vector<16x16xf32>
    %cst_24 = arith.constant dense<0xFF800000> : vector<16xf32>
    %54 = vector.multi_reduction <maximumf>, %53, %cst_24 [1] : vector<16x16xf32> to vector<16xf32>
    %55 = vector.shape_cast %54 : vector<16xf32> to vector<16x1xf32>
    %56 = vector.broadcast %55 : vector<16x1xf32> to vector<16x16xf32>
    %57 = arith.subf %53, %56 : vector<16x16xf32>
    %58 = math.exp %57 : vector<16x16xf32>
    %cst_25 = arith.constant dense<0.000000e+00> : vector<16xf32>
    %59 = vector.multi_reduction <add>, %58, %cst_25 [1] : vector<16x16xf32> to vector<16xf32>
    %60 = vector.shape_cast %59 : vector<16xf32> to vector<16x1xf32>
    %61 = tpu.reciprocal %60 {approx = true} : vector<16x1xf32> -> vector<16x1xf32>
    %62 = vector.broadcast %61 : vector<16x1xf32> to vector<16x16xf32>
    %63 = arith.mulf %58, %62 : vector<16x16xf32>
    %cst_26 = arith.constant dense<0.000000e+00> : vector<16x32xf32>
    %64 = tpu.matmul %63, %24, %cst_26 {dimension_numbers = #tpu.dot_dimension_numbers<[1], [0], [0], [1], [0, 0, 1, 1], [], []>} : vector<16x16xf32>, vector<16x32xf32>, vector<16x32xf32> -> vector<16x32xf32>
    %cst_27 = arith.constant 0.000000e+00 : f32
    %65 = vector.broadcast %cst_27 : f32 to vector<16x32xf32>
    %66 = arith.cmpf ogt, %64, %65 : vector<16x32xf32>
    %cst_28 = arith.constant 0.000000e+00 : f32
    %67 = vector.broadcast %cst_28 : f32 to vector<16x32xf32>
    %68 = arith.minimumf %64, %67 : vector<16x32xf32>
    %69 = math.exp %68 : vector<16x32xf32>
    %cst_29 = arith.constant 1.000000e+00 : f32
    %70 = vector.broadcast %cst_29 : f32 to vector<16x32xf32>
    %71 = arith.subf %69, %70 : vector<16x32xf32>
    %72 = arith.select %66, %64, %71 : vector<16x32xi1>, vector<16x32xf32>
    %73 = vector.extract_strided_slice %23 {offsets = [0, 32], sizes = [16, 32], strides = [1, 1]} : vector<16x64xf32> to vector<16x32xf32>
    %74 = vector.extract_strided_slice %21 {offsets = [1, 0], sizes = [1, 32], strides = [1, 1]} : vector<2x32xf32> to vector<1x32xf32>
    %75 = vector.extract_strided_slice %22 {offsets = [1, 0], sizes = [1, 32], strides = [1, 1]} : vector<2x32xf32> to vector<1x32xf32>
    %76 = tpu.transpose %73, [1, 0] : vector<16x32xf32> -> vector<32x16xf32>
    %cst_30 = arith.constant dense<0.000000e+00> : vector<1x16xf32>
    %77 = tpu.matmul %74, %76, %cst_30 {dimension_numbers = #tpu.dot_dimension_numbers<[1], [0], [0], [1], [0, 0, 1, 1], [], []>} : vector<1x32xf32>, vector<32x16xf32>, vector<1x16xf32> -> vector<1x16xf32>
    %78 = vector.broadcast %75 : vector<1x32xf32> to vector<16x32xf32>
    %79 = arith.mulf %73, %78 : vector<16x32xf32>
    %cst_31 = arith.constant dense<0.000000e+00> : vector<16xf32>
    %80 = vector.multi_reduction <add>, %79, %cst_31 [1] : vector<16x32xf32> to vector<16xf32>
    %81 = vector.shape_cast %80 : vector<16xf32> to vector<16x1xf32>
    %cst_32 = arith.constant 0.000000e+00 : f32
    %82 = vector.broadcast %cst_32 : f32 to vector<16x16xf32>
    %c3 = arith.constant 3 : index
    %83 = memref.load %arg16[%c3] : memref<6xf32, #tpu.memory_space<smem>>
    %84 = vector.broadcast %83 : f32 to vector<16x16xf32>
    %85 = arith.select %6, %84, %82 : vector<16x16xi1>, vector<16x16xf32>
    %c4 = arith.constant 4 : index
    %86 = memref.load %arg16[%c4] : memref<6xf32, #tpu.memory_space<smem>>
    %87 = vector.broadcast %86 : f32 to vector<16x16xf32>
    %88 = arith.select %8, %87, %85 : vector<16x16xi1>, vector<16x16xf32>
    %c5 = arith.constant 5 : index
    %89 = memref.load %arg16[%c5] : memref<6xf32, #tpu.memory_space<smem>>
    %90 = vector.broadcast %89 : f32 to vector<16x16xf32>
    %91 = arith.select %10, %90, %88 : vector<16x16xi1>, vector<16x16xf32>
    %92 = vector.broadcast %77 : vector<1x16xf32> to vector<16x16xf32>
    %93 = vector.broadcast %81 : vector<16x1xf32> to vector<16x16xf32>
    %94 = arith.addf %92, %93 : vector<16x16xf32>
    %95 = arith.addf %94, %91 : vector<16x16xf32>
    %cst_33 = arith.constant 0.000000e+00 : f32
    %96 = vector.broadcast %cst_33 : f32 to vector<16x16xf32>
    %97 = arith.cmpf oge, %95, %96 : vector<16x16xf32>
    %cst_34 = arith.constant 2.000000e-01 : f32
    %98 = vector.broadcast %cst_34 : f32 to vector<16x16xf32>
    %99 = arith.mulf %98, %95 : vector<16x16xf32>
    %100 = arith.select %97, %95, %99 : vector<16x16xi1>, vector<16x16xf32>
    %cst_35 = arith.constant -1.000000e+09 : f32
    %101 = vector.broadcast %cst_35 : f32 to vector<16x16xf32>
    %102 = arith.select %4, %100, %101 : vector<16x16xi1>, vector<16x16xf32>
    %cst_36 = arith.constant dense<0xFF800000> : vector<16xf32>
    %103 = vector.multi_reduction <maximumf>, %102, %cst_36 [1] : vector<16x16xf32> to vector<16xf32>
    %104 = vector.shape_cast %103 : vector<16xf32> to vector<16x1xf32>
    %105 = vector.broadcast %104 : vector<16x1xf32> to vector<16x16xf32>
    %106 = arith.subf %102, %105 : vector<16x16xf32>
    %107 = math.exp %106 : vector<16x16xf32>
    %cst_37 = arith.constant dense<0.000000e+00> : vector<16xf32>
    %108 = vector.multi_reduction <add>, %107, %cst_37 [1] : vector<16x16xf32> to vector<16xf32>
    %109 = vector.shape_cast %108 : vector<16xf32> to vector<16x1xf32>
    %110 = tpu.reciprocal %109 {approx = true} : vector<16x1xf32> -> vector<16x1xf32>
    %111 = vector.broadcast %110 : vector<16x1xf32> to vector<16x16xf32>
    %112 = arith.mulf %107, %111 : vector<16x16xf32>
    %cst_38 = arith.constant dense<0.000000e+00> : vector<16x32xf32>
    %113 = tpu.matmul %112, %73, %cst_38 {dimension_numbers = #tpu.dot_dimension_numbers<[1], [0], [0], [1], [0, 0, 1, 1], [], []>} : vector<16x16xf32>, vector<16x32xf32>, vector<16x32xf32> -> vector<16x32xf32>
    %cst_39 = arith.constant 0.000000e+00 : f32
    %114 = vector.broadcast %cst_39 : f32 to vector<16x32xf32>
    %115 = arith.cmpf ogt, %113, %114 : vector<16x32xf32>
    %cst_40 = arith.constant 0.000000e+00 : f32
    %116 = vector.broadcast %cst_40 : f32 to vector<16x32xf32>
    %117 = arith.minimumf %113, %116 : vector<16x32xf32>
    %118 = math.exp %117 : vector<16x32xf32>
    %cst_41 = arith.constant 1.000000e+00 : f32
    %119 = vector.broadcast %cst_41 : f32 to vector<16x32xf32>
    %120 = arith.subf %118, %119 : vector<16x32xf32>
    %121 = arith.select %115, %113, %120 : vector<16x32xi1>, vector<16x32xf32>
    %c0_42 = arith.constant 0 : index
    %c0_43 = arith.constant 0 : index
    %122 = vector.load %arg8[%c0_42, %c0_43] : memref<64x128xf32, #tpu.memory_space<vmem>>, vector<64x128xf32>
    %c0_44 = arith.constant 0 : index
    %c0_45 = arith.constant 0 : index
    %123 = vector.load %arg9[%c0_44, %c0_45] : memref<2x32xf32, #tpu.memory_space<vmem>>, vector<2x32xf32>
    %c0_46 = arith.constant 0 : index
    %c0_47 = arith.constant 0 : index
    %124 = vector.load %arg10[%c0_46, %c0_47] : memref<2x32xf32, #tpu.memory_space<vmem>>, vector<2x32xf32>
    %125 = vector.extract_strided_slice %122 {offsets = [0, 0], sizes = [32, 128], strides = [1, 1]} : vector<64x128xf32> to vector<32x128xf32>
    %cst_48 = arith.constant dense<0.000000e+00> : vector<16x128xf32>
    %126 = tpu.matmul %72, %125, %cst_48 {dimension_numbers = #tpu.dot_dimension_numbers<[1], [0], [0], [1], [0, 0, 1, 1], [], []>} : vector<16x32xf32>, vector<32x128xf32>, vector<16x128xf32> -> vector<16x128xf32>
    %127 = vector.extract_strided_slice %122 {offsets = [32, 0], sizes = [32, 128], strides = [1, 1]} : vector<64x128xf32> to vector<32x128xf32>
    %cst_49 = arith.constant dense<0.000000e+00> : vector<16x128xf32>
    %128 = tpu.matmul %121, %127, %cst_49 {dimension_numbers = #tpu.dot_dimension_numbers<[1], [0], [0], [1], [0, 0, 1, 1], [], []>} : vector<16x32xf32>, vector<32x128xf32>, vector<16x128xf32> -> vector<16x128xf32>
    %129 = arith.addf %126, %128 : vector<16x128xf32>
    %130 = vector.extract_strided_slice %129 {offsets = [0, 0], sizes = [16, 32], strides = [1, 1]} : vector<16x128xf32> to vector<16x32xf32>
    %131 = vector.extract_strided_slice %123 {offsets = [0, 0], sizes = [1, 32], strides = [1, 1]} : vector<2x32xf32> to vector<1x32xf32>
    %132 = vector.extract_strided_slice %124 {offsets = [0, 0], sizes = [1, 32], strides = [1, 1]} : vector<2x32xf32> to vector<1x32xf32>
    %133 = tpu.transpose %130, [1, 0] : vector<16x32xf32> -> vector<32x16xf32>
    %cst_50 = arith.constant dense<0.000000e+00> : vector<1x16xf32>
    %134 = tpu.matmul %131, %133, %cst_50 {dimension_numbers = #tpu.dot_dimension_numbers<[1], [0], [0], [1], [0, 0, 1, 1], [], []>} : vector<1x32xf32>, vector<32x16xf32>, vector<1x16xf32> -> vector<1x16xf32>
    %135 = vector.broadcast %132 : vector<1x32xf32> to vector<16x32xf32>
    %136 = arith.mulf %130, %135 : vector<16x32xf32>
    %cst_51 = arith.constant dense<0.000000e+00> : vector<16xf32>
    %137 = vector.multi_reduction <add>, %136, %cst_51 [1] : vector<16x32xf32> to vector<16xf32>
    %138 = vector.shape_cast %137 : vector<16xf32> to vector<16x1xf32>
    %cst_52 = arith.constant 0.000000e+00 : f32
    %139 = vector.broadcast %cst_52 : f32 to vector<16x16xf32>
    %c0_53 = arith.constant 0 : index
    %140 = memref.load %arg17[%c0_53] : memref<6xf32, #tpu.memory_space<smem>>
    %141 = vector.broadcast %140 : f32 to vector<16x16xf32>
    %142 = arith.select %6, %141, %139 : vector<16x16xi1>, vector<16x16xf32>
    %c1_54 = arith.constant 1 : index
    %143 = memref.load %arg17[%c1_54] : memref<6xf32, #tpu.memory_space<smem>>
    %144 = vector.broadcast %143 : f32 to vector<16x16xf32>
    %145 = arith.select %8, %144, %142 : vector<16x16xi1>, vector<16x16xf32>
    %c2_55 = arith.constant 2 : index
    %146 = memref.load %arg17[%c2_55] : memref<6xf32, #tpu.memory_space<smem>>
    %147 = vector.broadcast %146 : f32 to vector<16x16xf32>
    %148 = arith.select %10, %147, %145 : vector<16x16xi1>, vector<16x16xf32>
    %149 = vector.broadcast %134 : vector<1x16xf32> to vector<16x16xf32>
    %150 = vector.broadcast %138 : vector<16x1xf32> to vector<16x16xf32>
    %151 = arith.addf %149, %150 : vector<16x16xf32>
    %152 = arith.addf %151, %148 : vector<16x16xf32>
    %cst_56 = arith.constant 0.000000e+00 : f32
    %153 = vector.broadcast %cst_56 : f32 to vector<16x16xf32>
    %154 = arith.cmpf oge, %152, %153 : vector<16x16xf32>
    %cst_57 = arith.constant 2.000000e-01 : f32
    %155 = vector.broadcast %cst_57 : f32 to vector<16x16xf32>
    %156 = arith.mulf %155, %152 : vector<16x16xf32>
    %157 = arith.select %154, %152, %156 : vector<16x16xi1>, vector<16x16xf32>
    %cst_58 = arith.constant -1.000000e+09 : f32
    %158 = vector.broadcast %cst_58 : f32 to vector<16x16xf32>
    %159 = arith.select %4, %157, %158 : vector<16x16xi1>, vector<16x16xf32>
    %cst_59 = arith.constant dense<0xFF800000> : vector<16xf32>
    %160 = vector.multi_reduction <maximumf>, %159, %cst_59 [1] : vector<16x16xf32> to vector<16xf32>
    %161 = vector.shape_cast %160 : vector<16xf32> to vector<16x1xf32>
    %162 = vector.broadcast %161 : vector<16x1xf32> to vector<16x16xf32>
    %163 = arith.subf %159, %162 : vector<16x16xf32>
    %164 = math.exp %163 : vector<16x16xf32>
    %cst_60 = arith.constant dense<0.000000e+00> : vector<16xf32>
    %165 = vector.multi_reduction <add>, %164, %cst_60 [1] : vector<16x16xf32> to vector<16xf32>
    %166 = vector.shape_cast %165 : vector<16xf32> to vector<16x1xf32>
    %167 = tpu.reciprocal %166 {approx = true} : vector<16x1xf32> -> vector<16x1xf32>
    %168 = vector.broadcast %167 : vector<16x1xf32> to vector<16x16xf32>
    %169 = arith.mulf %164, %168 : vector<16x16xf32>
    %cst_61 = arith.constant 0.949999988 : f32
    %170 = vector.broadcast %cst_61 : f32 to vector<16x16xf32>
    %171 = arith.mulf %169, %170 : vector<16x16xf32>
    %cst_62 = arith.constant 5.000000e-02 : f32
    %172 = vector.broadcast %cst_62 : f32 to vector<16x16xf32>
    %173 = arith.mulf %63, %172 : vector<16x16xf32>
    %174 = arith.addf %171, %173 : vector<16x16xf32>
    %cst_63 = arith.constant dense<0.000000e+00> : vector<16x32xf32>
    %175 = tpu.matmul %174, %130, %cst_63 {dimension_numbers = #tpu.dot_dimension_numbers<[1], [0], [0], [1], [0, 0, 1, 1], [], []>} : vector<16x16xf32>, vector<16x32xf32>, vector<16x32xf32> -> vector<16x32xf32>
    %176 = vector.extract_strided_slice %129 {offsets = [0, 64], sizes = [16, 32], strides = [1, 1]} : vector<16x128xf32> to vector<16x32xf32>
    %177 = arith.addf %175, %176 : vector<16x32xf32>
    %cst_64 = arith.constant 0.000000e+00 : f32
    %178 = vector.broadcast %cst_64 : f32 to vector<16x32xf32>
    %179 = arith.cmpf ogt, %177, %178 : vector<16x32xf32>
    %cst_65 = arith.constant 0.000000e+00 : f32
    %180 = vector.broadcast %cst_65 : f32 to vector<16x32xf32>
    %181 = arith.minimumf %177, %180 : vector<16x32xf32>
    %182 = math.exp %181 : vector<16x32xf32>
    %cst_66 = arith.constant 1.000000e+00 : f32
    %183 = vector.broadcast %cst_66 : f32 to vector<16x32xf32>
    %184 = arith.subf %182, %183 : vector<16x32xf32>
    %185 = arith.select %179, %177, %184 : vector<16x32xi1>, vector<16x32xf32>
    %186 = vector.extract_strided_slice %129 {offsets = [0, 32], sizes = [16, 32], strides = [1, 1]} : vector<16x128xf32> to vector<16x32xf32>
    %187 = vector.extract_strided_slice %123 {offsets = [1, 0], sizes = [1, 32], strides = [1, 1]} : vector<2x32xf32> to vector<1x32xf32>
    %188 = vector.extract_strided_slice %124 {offsets = [1, 0], sizes = [1, 32], strides = [1, 1]} : vector<2x32xf32> to vector<1x32xf32>
    %189 = tpu.transpose %186, [1, 0] : vector<16x32xf32> -> vector<32x16xf32>
    %cst_67 = arith.constant dense<0.000000e+00> : vector<1x16xf32>
    %190 = tpu.matmul %187, %189, %cst_67 {dimension_numbers = #tpu.dot_dimension_numbers<[1], [0], [0], [1], [0, 0, 1, 1], [], []>} : vector<1x32xf32>, vector<32x16xf32>, vector<1x16xf32> -> vector<1x16xf32>
    %191 = vector.broadcast %188 : vector<1x32xf32> to vector<16x32xf32>
    %192 = arith.mulf %186, %191 : vector<16x32xf32>
    %cst_68 = arith.constant dense<0.000000e+00> : vector<16xf32>
    %193 = vector.multi_reduction <add>, %192, %cst_68 [1] : vector<16x32xf32> to vector<16xf32>
    %194 = vector.shape_cast %193 : vector<16xf32> to vector<16x1xf32>
    %cst_69 = arith.constant 0.000000e+00 : f32
    %195 = vector.broadcast %cst_69 : f32 to vector<16x16xf32>
    %c3_70 = arith.constant 3 : index
    %196 = memref.load %arg17[%c3_70] : memref<6xf32, #tpu.memory_space<smem>>
    %197 = vector.broadcast %196 : f32 to vector<16x16xf32>
    %198 = arith.select %6, %197, %195 : vector<16x16xi1>, vector<16x16xf32>
    %c4_71 = arith.constant 4 : index
    %199 = memref.load %arg17[%c4_71] : memref<6xf32, #tpu.memory_space<smem>>
    %200 = vector.broadcast %199 : f32 to vector<16x16xf32>
    %201 = arith.select %8, %200, %198 : vector<16x16xi1>, vector<16x16xf32>
    %c5_72 = arith.constant 5 : index
    %202 = memref.load %arg17[%c5_72] : memref<6xf32, #tpu.memory_space<smem>>
    %203 = vector.broadcast %202 : f32 to vector<16x16xf32>
    %204 = arith.select %10, %203, %201 : vector<16x16xi1>, vector<16x16xf32>
    %205 = vector.broadcast %190 : vector<1x16xf32> to vector<16x16xf32>
    %206 = vector.broadcast %194 : vector<16x1xf32> to vector<16x16xf32>
    %207 = arith.addf %205, %206 : vector<16x16xf32>
    %208 = arith.addf %207, %204 : vector<16x16xf32>
    %cst_73 = arith.constant 0.000000e+00 : f32
    %209 = vector.broadcast %cst_73 : f32 to vector<16x16xf32>
    %210 = arith.cmpf oge, %208, %209 : vector<16x16xf32>
    %cst_74 = arith.constant 2.000000e-01 : f32
    %211 = vector.broadcast %cst_74 : f32 to vector<16x16xf32>
    %212 = arith.mulf %211, %208 : vector<16x16xf32>
    %213 = arith.select %210, %208, %212 : vector<16x16xi1>, vector<16x16xf32>
    %cst_75 = arith.constant -1.000000e+09 : f32
    %214 = vector.broadcast %cst_75 : f32 to vector<16x16xf32>
    %215 = arith.select %4, %213, %214 : vector<16x16xi1>, vector<16x16xf32>
    %cst_76 = arith.constant dense<0xFF800000> : vector<16xf32>
    %216 = vector.multi_reduction <maximumf>, %215, %cst_76 [1] : vector<16x16xf32> to vector<16xf32>
    %217 = vector.shape_cast %216 : vector<16xf32> to vector<16x1xf32>
    %218 = vector.broadcast %217 : vector<16x1xf32> to vector<16x16xf32>
    %219 = arith.subf %215, %218 : vector<16x16xf32>
    %220 = math.exp %219 : vector<16x16xf32>
    %cst_77 = arith.constant dense<0.000000e+00> : vector<16xf32>
    %221 = vector.multi_reduction <add>, %220, %cst_77 [1] : vector<16x16xf32> to vector<16xf32>
    %222 = vector.shape_cast %221 : vector<16xf32> to vector<16x1xf32>
    %223 = tpu.reciprocal %222 {approx = true} : vector<16x1xf32> -> vector<16x1xf32>
    %224 = vector.broadcast %223 : vector<16x1xf32> to vector<16x16xf32>
    %225 = arith.mulf %220, %224 : vector<16x16xf32>
    %cst_78 = arith.constant 0.949999988 : f32
    %226 = vector.broadcast %cst_78 : f32 to vector<16x16xf32>
    %227 = arith.mulf %225, %226 : vector<16x16xf32>
    %cst_79 = arith.constant 5.000000e-02 : f32
    %228 = vector.broadcast %cst_79 : f32 to vector<16x16xf32>
    %229 = arith.mulf %112, %228 : vector<16x16xf32>
    %230 = arith.addf %227, %229 : vector<16x16xf32>
    %cst_80 = arith.constant dense<0.000000e+00> : vector<16x32xf32>
    %231 = tpu.matmul %230, %186, %cst_80 {dimension_numbers = #tpu.dot_dimension_numbers<[1], [0], [0], [1], [0, 0, 1, 1], [], []>} : vector<16x16xf32>, vector<16x32xf32>, vector<16x32xf32> -> vector<16x32xf32>
    %232 = vector.extract_strided_slice %129 {offsets = [0, 96], sizes = [16, 32], strides = [1, 1]} : vector<16x128xf32> to vector<16x32xf32>
    %233 = arith.addf %231, %232 : vector<16x32xf32>
    %cst_81 = arith.constant 0.000000e+00 : f32
    %234 = vector.broadcast %cst_81 : f32 to vector<16x32xf32>
    %235 = arith.cmpf ogt, %233, %234 : vector<16x32xf32>
    %cst_82 = arith.constant 0.000000e+00 : f32
    %236 = vector.broadcast %cst_82 : f32 to vector<16x32xf32>
    %237 = arith.minimumf %233, %236 : vector<16x32xf32>
    %238 = math.exp %237 : vector<16x32xf32>
    %cst_83 = arith.constant 1.000000e+00 : f32
    %239 = vector.broadcast %cst_83 : f32 to vector<16x32xf32>
    %240 = arith.subf %238, %239 : vector<16x32xf32>
    %241 = arith.select %235, %233, %240 : vector<16x32xi1>, vector<16x32xf32>
    %c0_84 = arith.constant 0 : index
    %c0_85 = arith.constant 0 : index
    %242 = vector.load %arg11[%c0_84, %c0_85] : memref<64x64xf32, #tpu.memory_space<vmem>>, vector<64x64xf32>
    %c0_86 = arith.constant 0 : index
    %c0_87 = arith.constant 0 : index
    %243 = vector.load %arg12[%c0_86, %c0_87] : memref<1x32xf32, #tpu.memory_space<vmem>>, vector<1x32xf32>
    %c0_88 = arith.constant 0 : index
    %c0_89 = arith.constant 0 : index
    %244 = vector.load %arg13[%c0_88, %c0_89] : memref<1x32xf32, #tpu.memory_space<vmem>>, vector<1x32xf32>
    %245 = vector.extract_strided_slice %242 {offsets = [0, 0], sizes = [32, 64], strides = [1, 1]} : vector<64x64xf32> to vector<32x64xf32>
    %cst_90 = arith.constant dense<0.000000e+00> : vector<16x64xf32>
    %246 = tpu.matmul %185, %245, %cst_90 {dimension_numbers = #tpu.dot_dimension_numbers<[1], [0], [0], [1], [0, 0, 1, 1], [], []>} : vector<16x32xf32>, vector<32x64xf32>, vector<16x64xf32> -> vector<16x64xf32>
    %247 = vector.extract_strided_slice %242 {offsets = [32, 0], sizes = [32, 64], strides = [1, 1]} : vector<64x64xf32> to vector<32x64xf32>
    %cst_91 = arith.constant dense<0.000000e+00> : vector<16x64xf32>
    %248 = tpu.matmul %241, %247, %cst_91 {dimension_numbers = #tpu.dot_dimension_numbers<[1], [0], [0], [1], [0, 0, 1, 1], [], []>} : vector<16x32xf32>, vector<32x64xf32>, vector<16x64xf32> -> vector<16x64xf32>
    %249 = arith.addf %246, %248 : vector<16x64xf32>
    %250 = vector.extract_strided_slice %249 {offsets = [0, 0], sizes = [16, 32], strides = [1, 1]} : vector<16x64xf32> to vector<16x32xf32>
    %251 = tpu.transpose %250, [1, 0] : vector<16x32xf32> -> vector<32x16xf32>
    %cst_92 = arith.constant dense<0.000000e+00> : vector<1x16xf32>
    %252 = tpu.matmul %243, %251, %cst_92 {dimension_numbers = #tpu.dot_dimension_numbers<[1], [0], [0], [1], [0, 0, 1, 1], [], []>} : vector<1x32xf32>, vector<32x16xf32>, vector<1x16xf32> -> vector<1x16xf32>
    %253 = vector.broadcast %244 : vector<1x32xf32> to vector<16x32xf32>
    %254 = arith.mulf %250, %253 : vector<16x32xf32>
    %cst_93 = arith.constant dense<0.000000e+00> : vector<16xf32>
    %255 = vector.multi_reduction <add>, %254, %cst_93 [1] : vector<16x32xf32> to vector<16xf32>
    %256 = vector.shape_cast %255 : vector<16xf32> to vector<16x1xf32>
    %cst_94 = arith.constant 0.000000e+00 : f32
    %257 = vector.broadcast %cst_94 : f32 to vector<16x16xf32>
    %c0_95 = arith.constant 0 : index
    %258 = memref.load %arg18[%c0_95] : memref<3xf32, #tpu.memory_space<smem>>
    %259 = vector.broadcast %258 : f32 to vector<16x16xf32>
    %260 = arith.select %6, %259, %257 : vector<16x16xi1>, vector<16x16xf32>
    %c1_96 = arith.constant 1 : index
    %261 = memref.load %arg18[%c1_96] : memref<3xf32, #tpu.memory_space<smem>>
    %262 = vector.broadcast %261 : f32 to vector<16x16xf32>
    %263 = arith.select %8, %262, %260 : vector<16x16xi1>, vector<16x16xf32>
    %c2_97 = arith.constant 2 : index
    %264 = memref.load %arg18[%c2_97] : memref<3xf32, #tpu.memory_space<smem>>
    %265 = vector.broadcast %264 : f32 to vector<16x16xf32>
    %266 = arith.select %10, %265, %263 : vector<16x16xi1>, vector<16x16xf32>
    %267 = vector.broadcast %252 : vector<1x16xf32> to vector<16x16xf32>
    %268 = vector.broadcast %256 : vector<16x1xf32> to vector<16x16xf32>
    %269 = arith.addf %267, %268 : vector<16x16xf32>
    %270 = arith.addf %269, %266 : vector<16x16xf32>
    %cst_98 = arith.constant 0.000000e+00 : f32
    %271 = vector.broadcast %cst_98 : f32 to vector<16x16xf32>
    %272 = arith.cmpf oge, %270, %271 : vector<16x16xf32>
    %cst_99 = arith.constant 2.000000e-01 : f32
    %273 = vector.broadcast %cst_99 : f32 to vector<16x16xf32>
    %274 = arith.mulf %273, %270 : vector<16x16xf32>
    %275 = arith.select %272, %270, %274 : vector<16x16xi1>, vector<16x16xf32>
    %cst_100 = arith.constant -1.000000e+09 : f32
    %276 = vector.broadcast %cst_100 : f32 to vector<16x16xf32>
    %277 = arith.select %4, %275, %276 : vector<16x16xi1>, vector<16x16xf32>
    %cst_101 = arith.constant dense<0xFF800000> : vector<16xf32>
    %278 = vector.multi_reduction <maximumf>, %277, %cst_101 [1] : vector<16x16xf32> to vector<16xf32>
    %279 = vector.shape_cast %278 : vector<16xf32> to vector<16x1xf32>
    %280 = vector.broadcast %279 : vector<16x1xf32> to vector<16x16xf32>
    %281 = arith.subf %277, %280 : vector<16x16xf32>
    %282 = math.exp %281 : vector<16x16xf32>
    %cst_102 = arith.constant dense<0.000000e+00> : vector<16xf32>
    %283 = vector.multi_reduction <add>, %282, %cst_102 [1] : vector<16x16xf32> to vector<16xf32>
    %284 = vector.shape_cast %283 : vector<16xf32> to vector<16x1xf32>
    %285 = tpu.reciprocal %284 {approx = true} : vector<16x1xf32> -> vector<16x1xf32>
    %286 = vector.broadcast %285 : vector<16x1xf32> to vector<16x16xf32>
    %287 = arith.mulf %282, %286 : vector<16x16xf32>
    %cst_103 = arith.constant dense<0.000000e+00> : vector<16x32xf32>
    %288 = tpu.matmul %287, %250, %cst_103 {dimension_numbers = #tpu.dot_dimension_numbers<[1], [0], [0], [1], [0, 0, 1, 1], [], []>} : vector<16x16xf32>, vector<16x32xf32>, vector<16x32xf32> -> vector<16x32xf32>
    %289 = vector.extract_strided_slice %249 {offsets = [0, 32], sizes = [16, 32], strides = [1, 1]} : vector<16x64xf32> to vector<16x32xf32>
    %290 = arith.addf %288, %289 : vector<16x32xf32>
    %c1_104 = arith.constant 1 : index
    %291 = memref.load %arg19[%c1_104] : memref<16xf32, #tpu.memory_space<smem>>
    %c3_105 = arith.constant 3 : index
    %292 = memref.load %arg19[%c3_105] : memref<16xf32, #tpu.memory_space<smem>>
    %c8 = arith.constant 8 : index
    %293 = memref.load %arg19[%c8] : memref<16xf32, #tpu.memory_space<smem>>
    %c9 = arith.constant 9 : index
    %294 = memref.load %arg19[%c9] : memref<16xf32, #tpu.memory_space<smem>>
    %c10 = arith.constant 10 : index
    %295 = memref.load %arg19[%c10] : memref<16xf32, #tpu.memory_space<smem>>
    %c11 = arith.constant 11 : index
    %296 = memref.load %arg19[%c11] : memref<16xf32, #tpu.memory_space<smem>>
    %c12 = arith.constant 12 : index
    %297 = memref.load %arg19[%c12] : memref<16xf32, #tpu.memory_space<smem>>
    %298 = arith.mulf %291, %293 : f32
    %299 = arith.addf %298, %294 : f32
    %300 = arith.mulf %299, %295 : f32
    %301 = arith.addf %300, %296 : f32
    %c0_106 = arith.constant 0 : index
    %c0_107 = arith.constant 0 : index
    %302 = vector.load %arg14[%c0_106, %c0_107] : memref<3x16xf32, #tpu.memory_space<vmem>>, vector<1x16xf32>
    %c1_108 = arith.constant 1 : index
    %c0_109 = arith.constant 0 : index
    %303 = vector.load %arg14[%c1_108, %c0_109] : memref<3x16xf32, #tpu.memory_space<vmem>>, vector<1x16xf32>
    %c2_110 = arith.constant 2 : index
    %c0_111 = arith.constant 0 : index
    %304 = vector.load %arg14[%c2_110, %c0_111] : memref<3x16xf32, #tpu.memory_space<vmem>>, vector<1x16xf32>
    %305 = vector.broadcast %292 : f32 to vector<1x16xf32>
    %306 = arith.mulf %305, %302 : vector<1x16xf32>
    %307 = arith.addf %306, %303 : vector<1x16xf32>
    %cst_112 = arith.constant 0.000000e+00 : f32
    %308 = vector.broadcast %cst_112 : f32 to vector<1x16xf32>
    %309 = arith.maximumf %307, %308 : vector<1x16xf32>
    %310 = arith.mulf %309, %304 : vector<1x16xf32>
    %cst_113 = arith.constant dense<0.000000e+00> : vector<1xf32>
    %311 = vector.multi_reduction <add>, %310, %cst_113 [1] : vector<1x16xf32> to vector<1xf32>
    %312 = vector.shape_cast %311 : vector<1xf32> to vector<1x1xf32>
    %313 = arith.addf %301, %297 : f32
    %314 = vector.broadcast %313 : f32 to vector<1x1xf32>
    %315 = arith.addf %312, %314 : vector<1x1xf32>
    %316 = arith.mulf %290, %17 : vector<16x32xf32>
    %317 = vector.broadcast %315 : vector<1x1xf32> to vector<16x32xf32>
    %318 = arith.addf %316, %317 : vector<16x32xf32>
    %319 = arith.mulf %290, %290 : vector<16x32xf32>
    %cst_114 = arith.constant dense<0.000000e+00> : vector<16xf32>
    %320 = vector.multi_reduction <add>, %319, %cst_114 [1] : vector<16x32xf32> to vector<16xf32>
    %321 = vector.shape_cast %320 : vector<16xf32> to vector<16x1xf32>
    %cst_115 = arith.constant 1.000000e-24 : f32
    %322 = vector.broadcast %cst_115 : f32 to vector<16x1xf32>
    %323 = arith.maximumf %321, %322 : vector<16x1xf32>
    %324 = math.rsqrt %323 : vector<16x1xf32>
    %325 = vector.broadcast %324 : vector<16x1xf32> to vector<16x32xf32>
    %326 = arith.mulf %290, %325 : vector<16x32xf32>
    %327 = arith.mulf %318, %318 : vector<16x32xf32>
    %cst_116 = arith.constant dense<0.000000e+00> : vector<16xf32>
    %328 = vector.multi_reduction <add>, %327, %cst_116 [1] : vector<16x32xf32> to vector<16xf32>
    %329 = vector.shape_cast %328 : vector<16xf32> to vector<16x1xf32>
    %cst_117 = arith.constant 1.000000e-24 : f32
    %330 = vector.broadcast %cst_117 : f32 to vector<16x1xf32>
    %331 = arith.maximumf %329, %330 : vector<16x1xf32>
    %332 = math.rsqrt %331 : vector<16x1xf32>
    %333 = vector.broadcast %332 : vector<16x1xf32> to vector<16x32xf32>
    %334 = arith.mulf %318, %333 : vector<16x32xf32>
    %c0_118 = arith.constant 0 : index
    %c0_119 = arith.constant 0 : index
    %335 = vector.load %arg15[%c0_118, %c0_119] : memref<64x32xf32, #tpu.memory_space<vmem>>, vector<64x32xf32>
    %336 = vector.extract_strided_slice %335 {offsets = [0, 0], sizes = [32, 32], strides = [1, 1]} : vector<64x32xf32> to vector<32x32xf32>
    %cst_120 = arith.constant dense<0.000000e+00> : vector<16x32xf32>
    %337 = tpu.matmul %326, %336, %cst_120 {dimension_numbers = #tpu.dot_dimension_numbers<[1], [0], [0], [1], [0, 0, 1, 1], [], []>} : vector<16x32xf32>, vector<32x32xf32>, vector<16x32xf32> -> vector<16x32xf32>
    %338 = vector.extract_strided_slice %335 {offsets = [32, 0], sizes = [32, 32], strides = [1, 1]} : vector<64x32xf32> to vector<32x32xf32>
    %cst_121 = arith.constant dense<0.000000e+00> : vector<16x32xf32>
    %339 = tpu.matmul %334, %338, %cst_121 {dimension_numbers = #tpu.dot_dimension_numbers<[1], [0], [0], [1], [0, 0, 1, 1], [], []>} : vector<16x32xf32>, vector<32x32xf32>, vector<16x32xf32> -> vector<16x32xf32>
    %340 = arith.addf %337, %339 : vector<16x32xf32>
    %c0_122 = arith.constant 0 : index
    %c0_123 = arith.constant 0 : index
    %341 = vector.load %arg20[%c0_122, %c0_123] : memref<16x32xf32, #tpu.memory_space<vmem>>, vector<16x32xf32>
    tpu.vector_store %arg20[%c0_122, %c0_123], %340 {strides = array<i32>} : memref<16x32xf32, #tpu.memory_space<vmem>>, vector<16x32xf32>,
    return
  }
}

</mosaic_0001>

<llo_original>
// kernel: hetcan_forward.1
$region0: #{hetcan_forward.1}
  #allocation0 [shape = 'u32[]', space=smem, size = 0x4, offset = 0x4, fixed_abs, tag = 'smem constant byte address 0x4 - core index']
  #allocation1 [shape = 'u32[144,128]{1,0:T(1,128)}', space=vmem, size = 0x12000, scoped, tag = 'internal scratch']
  %s0 = inlined_call_operand.vmem [shape: f32[16,32], index: 0, kind: input, shape index: {}]
  %s1 = inlined_call_operand.vmem [shape: f32[16,16], index: 1, kind: input, shape index: {}]
  %s2 = inlined_call_operand.vmem [shape: s32[16,16], index: 2, kind: input, shape index: {}]
  %s3 = inlined_call_operand.vmem [shape: s32[16,1], index: 3, kind: input, shape index: {}]
  %s4 = inlined_call_operand.vmem [shape: f32[3,32], index: 4, kind: input, shape index: {}]
  %s5 = inlined_call_operand.vmem [shape: f32[32,64], index: 5, kind: input, shape index: {}]
  %s6 = inlined_call_operand.vmem [shape: f32[2,32], index: 6, kind: input, shape index: {}]
  %s7 = inlined_call_operand.vmem [shape: f32[2,32], index: 7, kind: input, shape index: {}]
  %s8 = inlined_call_operand.vmem [shape: f32[64,128], index: 8, kind: input, shape index: {}]
  %s9 = inlined_call_operand.vmem [shape: f32[2,32], index: 9, kind: input, shape index: {}]
  %s10 = inlined_call_operand.vmem [shape: f32[2,32], index: 10, kind: input, shape index: {}]
  %s11 = inlined_call_operand.vmem [shape: f32[64,64], index: 11, kind: input, shape index: {}]
  %s12 = inlined_call_operand.vmem [shape: f32[1,32], index: 12, kind: input, shape index: {}]
  %s13 = inlined_call_operand.vmem [shape: f32[1,32], index: 13, kind: input, shape index: {}]
  %s14 = inlined_call_operand.vmem [shape: f32[3,16], index: 14, kind: input, shape index: {}]
  %s15 = inlined_call_operand.vmem [shape: f32[64,32], index: 15, kind: input, shape index: {}]
  %s16 = inlined_call_operand.vmem [shape: f32[6], index: 16, kind: input, shape index: {}]
  %s17 = inlined_call_operand.vmem [shape: f32[6], index: 17, kind: input, shape index: {}]
  %s18 = inlined_call_operand.vmem [shape: f32[3], index: 18, kind: input, shape index: {}]
  %s19 = inlined_call_operand.vmem [shape: f32[16], index: 19, kind: input, shape index: {}]
  %s20 = inlined_call_operand.hbm [shape: f32[16,32], index: 20, kind: output, shape index: {}]
  %s21 = sld [smem:[#allocation0]]
  $region106: #{hetcan_forward.1} parent=0
    _
  %s23 = ssub.s32 1, %s21
  %s24 = scalar_select 0, %s23, %s21
  $region1: #{hetcan_forward.1} parent=0
    #allocation2 [shape = 'u8[512]{0}', space=smem, size = 0x200, scoped, tag = 'input window, operand 16, single buffered']
    #allocation3 [shape = 's32[1]{0}', space=sflag, size = 0x4, scoped, tag = 'scoped memory for hetcan_forward.1']
    #allocation4 [shape = 's32[1]{0}', space=sflag, size = 0x4, scoped, tag = 'scoped memory for hetcan_forward.1']
    #allocation5 [shape = 'u8[512]{0}', space=smem, size = 0x200, scoped, tag = 'input window, operand 17, single buffered']
    #allocation6 [shape = 's32[1]{0}', space=sflag, size = 0x4, scoped, tag = 'scoped memory for hetcan_forward.1']
    #allocation7 [shape = 'u8[512]{0}', space=smem, size = 0x200, scoped, tag = 'input window, operand 18, single buffered']
    #allocation8 [shape = 'u8[512]{0}', space=smem, size = 0x200, scoped, tag = 'input window, operand 19, single buffered']
    #allocation9 [shape = 's32[1]{0}', space=sflag, size = 0x4, scoped, tag = 'scoped memory for hetcan_forward.1']
    #allocation10 [shape = 'u8[8192]{0}', space=vmem, size = 0x2000, scoped, tag = 'output window, operand 0, single buffered']
    %25 = vsyncpa [#allocation4], 0
    %26 = vsyncpa [#allocation6], 0
    %27 = vsyncpa [#allocation9], 0
    %28 = vsyncpa [#allocation3], 0
    // Predicated region
    $region2: #{hetcan_forward.1} parent=1 // pred_check
      _
    $region3: #{hetcan_forward.1} parent=1 // pred_check_branch
      %30 = sbr.rel (0) target = $region5
    $region4: #{hetcan_forward.1} parent=1 // pred_region
      _
    $region5: #{hetcan_forward.1} parent=1 // pred_fallthru
      _
    // Predicated region
    $region6: #{hetcan_forward.1} parent=1 // pred_check
      _
    $region7: #{hetcan_forward.1} parent=1 // pred_check_branch
      %32 = sbr.rel (0) target = $region9
    $region8: #{hetcan_forward.1} parent=1 // pred_region
      _
    $region9: #{hetcan_forward.1} parent=1 // pred_fallthru
      _
    // Predicated region
    $region10: #{hetcan_forward.1} parent=1 // pred_check
      _
    $region11: #{hetcan_forward.1} parent=1 // pred_check_branch
      %34 = sbr.rel (0) target = $region13
    $region12: #{hetcan_forward.1} parent=1 // pred_region
      _
    $region13: #{hetcan_forward.1} parent=1 // pred_fallthru
      _
    // Predicated region
    $region14: #{hetcan_forward.1} parent=1 // pred_check
      _
    $region15: #{hetcan_forward.1} parent=1 // pred_check_branch
      %36 = sbr.rel (0) target = $region17
    $region16: #{hetcan_forward.1} parent=1 // pred_region
      _
    $region17: #{hetcan_forward.1} parent=1 // pred_fallthru
      _
    // Predicated region
    $region18: #{hetcan_forward.1} parent=1 // pred_check
      _
    $region19: #{hetcan_forward.1} parent=1 // pred_check_branch
      %38 = sbr.rel (0) target = $region21
    $region20: #{hetcan_forward.1} parent=1 // pred_region
      _
    $region21: #{hetcan_forward.1} parent=1 // pred_fallthru
      _
    // Predicated region
    $region22: #{hetcan_forward.1} parent=1 // pred_check
      _
    $region23: #{hetcan_forward.1} parent=1 // pred_check_branch
      %40 = sbr.rel (0) target = $region25
    $region24: #{hetcan_forward.1} parent=1 // pred_region
      _
    $region25: #{hetcan_forward.1} parent=1 // pred_fallthru
      _
    // Predicated region
    $region26: #{hetcan_forward.1} parent=1 // pred_check
      _
    $region27: #{hetcan_forward.1} parent=1 // pred_check_branch
      %42 = sbr.rel (0) target = $region29
    $region28: #{hetcan_forward.1} parent=1 // pred_region
      _
    $region29: #{hetcan_forward.1} parent=1 // pred_fallthru
      _
    // Predicated region
    $region30: #{hetcan_forward.1} parent=1 // pred_check
      _
    $region31: #{hetcan_forward.1} parent=1 // pred_check_branch
      %44 = sbr.rel (0) target = $region33
    $region32: #{hetcan_forward.1} parent=1 // pred_region
      _
    $region33: #{hetcan_forward.1} parent=1 // pred_fallthru
      _
    // Predicated region
    $region34: #{hetcan_forward.1} parent=1 // pred_check
      _
    $region35: #{hetcan_forward.1} parent=1 // pred_check_branch
      %46 = sbr.rel (0) target = $region37
    $region36: #{hetcan_forward.1} parent=1 // pred_region
      _
    $region37: #{hetcan_forward.1} parent=1 // pred_fallthru
      _
    // Predicated region
    $region38: #{hetcan_forward.1} parent=1 // pred_check
      _
    $region39: #{hetcan_forward.1} parent=1 // pred_check_branch
      %48 = sbr.rel (0) target = $region41
    $region40: #{hetcan_forward.1} parent=1 // pred_region
      _
    $region41: #{hetcan_forward.1} parent=1 // pred_fallthru
      _
    // Predicated region
    $region42: #{hetcan_forward.1} parent=1 // pred_check
      _
    $region43: #{hetcan_forward.1} parent=1 // pred_check_branch
      %50 = sbr.rel (0) target = $region45
    $region44: #{hetcan_forward.1} parent=1 // pred_region
      _
    $region45: #{hetcan_forward.1} parent=1 // pred_fallthru
      _
    // Predicated region
    $region46: #{hetcan_forward.1} parent=1 // pred_check
      _
    $region47: #{hetcan_forward.1} parent=1 // pred_check_branch
      %52 = sbr.rel (0) target = $region49
    $region48: #{hetcan_forward.1} parent=1 // pred_region
      _
    $region49: #{hetcan_forward.1} parent=1 // pred_fallthru
      _
    // Predicated region
    $region50: #{hetcan_forward.1} parent=1 // pred_check
      _
    $region51: #{hetcan_forward.1} parent=1 // pred_check_branch
      %54 = sbr.rel (0) target = $region53
    $region52: #{hetcan_forward.1} parent=1 // pred_region
      _
    $region53: #{hetcan_forward.1} parent=1 // pred_fallthru
      _
    // Predicated region
    $region54: #{hetcan_forward.1} parent=1 // pred_check
      _
    $region55: #{hetcan_forward.1} parent=1 // pred_check_branch
      %56 = sbr.rel (0) target = $region57
    $region56: #{hetcan_forward.1} parent=1 // pred_region
      _
    $region57: #{hetcan_forward.1} parent=1 // pred_fallthru
      _
    // Predicated region
    $region58: #{hetcan_forward.1} parent=1 // pred_check
      _
    $region59: #{hetcan_forward.1} parent=1 // pred_check_branch
      %58 = sbr.rel (0) target = $region61
    $region60: #{hetcan_forward.1} parent=1 // pred_region
      _
    $region61: #{hetcan_forward.1} parent=1 // pred_fallthru
      _
    // Predicated region
    $region62: #{hetcan_forward.1} parent=1 // pred_check
      _
    $region63: #{hetcan_forward.1} parent=1 // pred_check_branch
      %60 = sbr.rel (0) target = $region65
    $region64: #{hetcan_forward.1} parent=1 // pred_region
      _
    $region65: #{hetcan_forward.1} parent=1 // pred_fallthru
      _
    // Predicated region
    $region66: #{hetcan_forward.1} parent=1 // pred_check
      _
    $region67: #{hetcan_forward.1} parent=1 // pred_check_branch
      %62 = sbr.rel (0) target = $region69
    $region68: #{hetcan_forward.1} parent=1 // pred_region
      %s64 = ssub.s32 16, 16
      %65 = vsyncadd [#allocation4], %s64
      %s67 = sshll.u32 %s16, 4
      %s68 = int_to_ptr.vmem [resolvable:$true] %s67
      %70 = dma.vmem_to_smem %s68, 16, [#allocation2], [#allocation4]
    $region69: #{hetcan_forward.1} parent=1 // pred_fallthru
      _
    // Predicated region
    $region70: #{hetcan_forward.1} parent=1 // pred_check
      _
    $region71: #{hetcan_forward.1} parent=1 // pred_check_branch
      %72 = sbr.rel (0) target = $region73
    $region72: #{hetcan_forward.1} parent=1 // pred_region
      %s74 = ssub.s32 16, 16
      %75 = vsyncadd [#allocation6], %s74
      %s77 = sshll.u32 %s17, 4
      %s78 = int_to_ptr.vmem [resolvable:$true] %s77
      %80 = dma.vmem_to_smem %s78, 16, [#allocation5], [#allocation6]
    $region73: #{hetcan_forward.1} parent=1 // pred_fallthru
      _
    // Predicated region
    $region74: #{hetcan_forward.1} parent=1 // pred_check
      _
    $region75: #{hetcan_forward.1} parent=1 // pred_check_branch
      %82 = sbr.rel (0) target = $region77
    $region76: #{hetcan_forward.1} parent=1 // pred_region
      %s84 = ssub.s32 16, 16
      %85 = vsyncadd [#allocation6], %s84
      %s87 = sshll.u32 %s18, 4
      %s88 = int_to_ptr.vmem [resolvable:$true] %s87
      %90 = dma.vmem_to_smem %s88, 16, [#allocation7], [#allocation6]
    $region77: #{hetcan_forward.1} parent=1 // pred_fallthru
      _
    // Predicated region
    $region78: #{hetcan_forward.1} parent=1 // pred_check
      _
    $region79: #{hetcan_forward.1} parent=1 // pred_check_branch
      %92 = sbr.rel (0) target = $region81
    $region80: #{hetcan_forward.1} parent=1 // pred_region
      %s94 = ssub.s32 16, 16
      %95 = vsyncadd [#allocation9], %s94
      %s97 = sshll.u32 %s19, 4
      %s98 = int_to_ptr.vmem [resolvable:$true] %s97
      %100 = dma.vmem_to_smem %s98, 16, [#allocation8], [#allocation9]
    $region81: #{hetcan_forward.1} parent=1 // pred_fallthru
      _
    // Predicated region
    $region82: #{hetcan_forward.1} parent=1 // pred_check
      _
    $region83: #{hetcan_forward.1} parent=1 // pred_check_branch
      %102 = sbr.rel (0) target = $region85
    $region84: #{hetcan_forward.1} parent=1 // pred_region
      %103 = dma.done [#allocation4], 16
    $region85: #{hetcan_forward.1} parent=1 // pred_fallthru
      _
    // Predicated region
    $region86: #{hetcan_forward.1} parent=1 // pred_check
      _
    $region87: #{hetcan_forward.1} parent=1 // pred_check_branch
      %105 = sbr.rel (0) target = $region89
    $region88: #{hetcan_forward.1} parent=1 // pred_region
      %106 = dma.done [#allocation6], 16
    $region89: #{hetcan_forward.1} parent=1 // pred_fallthru
      _
    // Predicated region
    $region90: #{hetcan_forward.1} parent=1 // pred_check
      _
    $region91: #{hetcan_forward.1} parent=1 // pred_check_branch
      %108 = sbr.rel (0) target = $region93
    $region92: #{hetcan_forward.1} parent=1 // pred_region
      %109 = dma.done [#allocation6], 16
    $region93: #{hetcan_forward.1} parent=1 // pred_fallthru
      _
    // Predicated region
    $region94: #{hetcan_forward.1} parent=1 // pred_check
      _
    $region95: #{hetcan_forward.1} parent=1 // pred_check_branch
      %111 = sbr.rel (0) target = $region97
    $region96: #{hetcan_forward.1} parent=1 // pred_region
      %112 = dma.done [#allocation9], 16
    $region97: #{hetcan_forward.1} parent=1 // pred_fallthru
      _
    %113 = sfence
    %v114 = vld [vmem:[%s1] sm:$0xff]
    %v115 = vld [vmem:[%s1 + $0x8] sm:$0xff]
    %v116 = vld [vmem:[%s2] sm:$0xff]
    %v117 = vld [vmem:[%s2 + $0x8] sm:$0xff]
    %v118 = vld [vmem:[%s3] sm:$0xff]
    %v119 = vld [vmem:[%s3 + $0x8] sm:$0xff]
    %vm120 = vcmp.gt.f32.partialorder %v114, 0.0
    %vm121 = vcmp.gt.f32.partialorder %v115, 0.0
    %vm122 = vcmp.eq.s32.totalorder %v116, 0
    %vm123 = vcmp.eq.s32.totalorder %v117, 0
    %vm124 = vcmp.eq.s32.totalorder %v116, 1
    %vm125 = vcmp.eq.s32.totalorder %v117, 1
    %vm126 = vcmp.eq.s32.totalorder %v116, 2
    %vm127 = vcmp.eq.s32.totalorder %v117, 2
    %v128 = vld [vmem:[%s4] sm:$0x7]
    %v129 = vlaneseq
    %v130 = vand.u32 %v129, 127
    %131 = vset.pattern.permute.xlu0 0
    %132 = vperm.xlu0 %131, %v118
    %v133 = vpop.permute.xlu0 %132
    %134 = vset.pattern.permute.xlu0 0
    %135 = vperm.xlu0 %134, %v119
    %v136 = vpop.permute.xlu0 %135
    %vm137 = vcmp.eq.s32.totalorder %v133, %v130
    %vm138 = vcmp.eq.s32.totalorder %v136, %v130
    %v139 = vsel %vm137, 1, 0
    %v140 = vsel %vm138, 1, 0
    %v141 = vcvt.s32.f32 %v139
    %v142 = vcvt.s32.f32 %v140
    %vm143 = vcmask 23552
    %v145 = vsel %vm143, %v141, 0
    %v148 = vsel %vm143, %v142, 0
    %vm150 = vcmask 1042432
    %v152 = vsel %vm150, %v128, 0
    %154 = vmatprep.subr.mxu0 0.0
    %155 = vmatpush1.msra.mxu0 0.0
    %156 = vmatprep.subr.mxu0 0.0
    %157 = vmatpush1.msra.mxu0 0.0
    %158 = vmatprep.subr.mxu0 0.0
    %159 = vmatpush1.msra.mxu0 0.0
    %160 = vmatprep.subr.mxu0 0.0
    %161 = vmatpush1.msra.mxu0 0.0
    %162 = vmatprep.subr.mxu0 0.0
    %163 = vmatpush1.msra.mxu0 0.0
    %164 = vmatprep.subr.mxu0 0.0
    %165 = vmatpush1.msra.mxu0 0.0
    %166 = vmatprep.subr.mxu0 0.0
    %167 = vmatpush1.msra.mxu0 0.0
    %168 = vmatprep.subr.mxu0 0.0
    %169 = vmatpush1.msra.mxu0 0.0
    %170 = vmatprep.subr.mxu0 0.0
    %171 = vmatpush1.msra.mxu0 0.0
    %172 = vmatprep.subr.mxu0 0.0
    %173 = vmatpush1.msra.mxu0 0.0
    %174 = vmatprep.subr.mxu0 0.0
    %175 = vmatpush1.msra.mxu0 0.0
    %176 = vmatprep.subr.mxu0 0.0
    %177 = vmatpush1.msra.mxu0 0.0
    %178 = vmatprep.subr.mxu0 0.0
    %179 = vmatpush1.msra.mxu0 0.0
    %180 = vmatprep.subr.mxu0 0.0
    %181 = vmatpush1.msra.mxu0 0.0
    %182 = vmatprep.subr.mxu0 0.0
    %183 = vmatpush1.msra.mxu0 0.0
    %184 = vmatprep.subr.mxu0 0.0
    %185 = vmatpush1.msra.mxu0 %v152
    %186 = vmatprep.subr.mxu0 0.0
    %187 = vmatpush2.msra.mxu0 0.0
    %188 = vmatprep.subr.mxu0 0.0
    %189 = vmatpush2.msra.mxu0 0.0
    %190 = vmatprep.subr.mxu0 0.0
    %191 = vmatpush2.msra.mxu0 0.0
    %192 = vmatprep.subr.mxu0 0.0
    %193 = vmatpush2.msra.mxu0 0.0
    %194 = vmatprep.subr.mxu0 0.0
    %195 = vmatpush2.msra.mxu0 0.0
    %196 = vmatprep.subr.mxu0 0.0
    %197 = vmatpush2.msra.mxu0 0.0
    %198 = vmatprep.subr.mxu0 0.0
    %199 = vmatpush2.msra.mxu0 0.0
    %200 = vmatprep.subr.mxu0 0.0
    %201 = vmatpush2.msra.mxu0 0.0
    %202 = vmatprep.subr.mxu0 0.0
    %203 = vmatpush2.msra.mxu0 0.0
    %204 = vmatprep.subr.mxu0 0.0
    %205 = vmatpush2.msra.mxu0 0.0
    %206 = vmatprep.subr.mxu0 0.0
    %207 = vmatpush2.msra.mxu0 0.0
    %208 = vmatprep.subr.mxu0 0.0
    %209 = vmatpush2.msra.mxu0 0.0
    %210 = vmatprep.subr.mxu0 0.0
    %211 = vmatpush2.msra.mxu0 0.0
    %212 = vmatprep.subr.mxu0 0.0
    %213 = vmatpush2.msra.mxu0 0.0
    %214 = vmatprep.subr.mxu0 0.0
    %215 = vmatpush2.msra.mxu0 0.0
    %216 = vmatprep.subr.mxu0 0.0
    %217 = vmatpush2.msra.mxu0 0.0
    %218 = vmatprep.mubr.f32.mxu0 0.0
    %219 = vmatmul.mubr.f32.gmra.mxu0 %v145
    %v220 = vpop.f32.mrf.mxu0
    %v221 = vadd.f32 0.0, %v220
    %v222 = vpop.f32.mrf.mxu0
    %223 = vmatprep.mubr.f32.mxu0 0.0
    %224 = vmatmul.mubr.f32.gmra.mxu0 %v148
    %v225 = vpop.f32.mrf.mxu0
    %v226 = vadd.f32 0.0, %v225
    %v227 = vpop.f32.mrf.mxu0
    %228 = vdwg.mxu0
    %v229 = vld [vmem:[%s0] sm:$0xff]
    %v230 = vld [vmem:[%s0 + $0x8] sm:$0xff]
    %v231 = vmul.f32 %v229, %v221
    %v232 = vmul.f32 %v230, %v226
    %v233 = vld [vmem:[%s5] sm:$0xff]
    %v234 = vld [vmem:[%s5 + $0x8] sm:$0xff]
    %v235 = vld [vmem:[%s5 + $0x10] sm:$0xff]
    %v236 = vld [vmem:[%s5 + $0x18] sm:$0xff]
    %v237 = vld [vmem:[%s6] sm:$0x3]
    %v238 = vld [vmem:[%s7] sm:$0x3]
    %vm239 = vcmask 261120
    %v241 = vsel %vm239, %v231, 0
    %v244 = vsel %vm239, %v232, 0
    %246 = vmatprep.subr.mxu0 0.0
    %247 = vmatpush1.msra.mxu0 0.0
    %248 = vmatprep.subr.mxu0 0.0
    %249 = vmatpush1.msra.mxu0 0.0
    %250 = vmatprep.subr.mxu0 0.0
    %251 = vmatpush1.msra.mxu0 0.0
    %252 = vmatprep.subr.mxu0 0.0
    %253 = vmatpush1.msra.mxu0 0.0
    %254 = vmatprep.subr.mxu0 0.0
    %255 = vmatpush1.msra.mxu0 0.0
    %256 = vmatprep.subr.mxu0 0.0
    %257 = vmatpush1.msra.mxu0 0.0
    %258 = vmatprep.subr.mxu0 0.0
    %259 = vmatpush1.msra.mxu0 0.0
    %260 = vmatprep.subr.mxu0 0.0
    %261 = vmatpush1.msra.mxu0 0.0
    %262 = vmatprep.subr.mxu0 0.0
    %263 = vmatpush1.msra.mxu0 0.0
    %264 = vmatprep.subr.mxu0 0.0
    %265 = vmatpush1.msra.mxu0 0.0
    %266 = vmatprep.subr.mxu0 0.0
    %267 = vmatpush1.msra.mxu0 0.0
    %268 = vmatprep.subr.mxu0 0.0
    %269 = vmatpush1.msra.mxu0 0.0
    %270 = vmatprep.subr.mxu0 0.0
    %271 = vmatpush1.msra.mxu0 %v236
    %272 = vmatprep.subr.mxu0 0.0
    %273 = vmatpush1.msra.mxu0 %v235
    %274 = vmatprep.subr.mxu0 0.0
    %275 = vmatpush1.msra.mxu0 %v234
    %276 = vmatprep.subr.mxu0 0.0
    %277 = vmatpush1.msra.mxu0 %v233
    %278 = vmatprep.subr.mxu0 0.0
    %279 = vmatpush2.msra.mxu0 0.0
    %280 = vmatprep.subr.mxu0 0.0
    %281 = vmatpush2.msra.mxu0 0.0
    %282 = vmatprep.subr.mxu0 0.0
    %283 = vmatpush2.msra.mxu0 0.0
    %284 = vmatprep.subr.mxu0 0.0
    %285 = vmatpush2.msra.mxu0 0.0
    %286 = vmatprep.subr.mxu0 0.0
    %287 = vmatpush2.msra.mxu0 0.0
    %288 = vmatprep.subr.mxu0 0.0
    %289 = vmatpush2.msra.mxu0 0.0
    %290 = vmatprep.subr.mxu0 0.0
    %291 = vmatpush2.msra.mxu0 0.0
    %292 = vmatprep.subr.mxu0 0.0
    %293 = vmatpush2.msra.mxu0 0.0
    %294 = vmatprep.subr.mxu0 0.0
    %295 = vmatpush2.msra.mxu0 0.0
    %296 = vmatprep.subr.mxu0 0.0
    %297 = vmatpush2.msra.mxu0 0.0
    %298 = vmatprep.subr.mxu0 0.0
    %299 = vmatpush2.msra.mxu0 0.0
    %300 = vmatprep.subr.mxu0 0.0
    %301 = vmatpush2.msra.mxu0 0.0
    %302 = vmatprep.subr.mxu0 0.0
    %303 = vmatpush2.msra.mxu0 0.0
    %304 = vmatprep.subr.mxu0 0.0
    %305 = vmatpush2.msra.mxu0 0.0
    %306 = vmatprep.subr.mxu0 0.0
    %307 = vmatpush2.msra.mxu0 0.0
    %308 = vmatprep.subr.mxu0 0.0
    %309 = vmatpush2.msra.mxu0 0.0
    %310 = vmatprep.mubr.f32.mxu0 0.0
    %311 = vmatmul.mubr.f32.gmra.mxu0 %v241
    %v312 = vpop.f32.mrf.mxu0
    %v313 = vadd.f32 0.0, %v312
    %v314 = vpop.f32.mrf.mxu0
    %315 = vmatprep.mubr.f32.mxu0 0.0
    %316 = vmatmul.mubr.f32.gmra.mxu0 %v244
    %v317 = vpop.f32.mrf.mxu0
    %v318 = vadd.f32 0.0, %v317
    %v319 = vpop.f32.mrf.mxu0
    %320 = vdwg.mxu0
    %v322 = vsel %vm239, %v237, 0
    %v325 = vsel %vm239, %v313, 0
    %v328 = vsel %vm239, %v318, 0
    %330 = vmatprep.subr.mxu0 0.0
    %331 = vmatpush1.xpose.msra.mxu0 0.0
    %332 = vmatprep.subr.mxu0 0.0
    %333 = vmatpush1.xpose.msra.mxu0 0.0
    %334 = vmatprep.subr.mxu0 0.0
    %335 = vmatpush1.xpose.msra.mxu0 0.0
    %336 = vmatprep.subr.mxu0 0.0
    %337 = vmatpush1.xpose.msra.mxu0 0.0
    %338 = vmatprep.subr.mxu0 0.0
    %339 = vmatpush1.xpose.msra.mxu0 0.0
    %340 = vmatprep.subr.mxu0 0.0
    %341 = vmatpush1.xpose.msra.mxu0 0.0
    %342 = vmatprep.subr.mxu0 0.0
    %343 = vmatpush1.xpose.msra.mxu0 0.0
    %344 = vmatprep.subr.mxu0 0.0
    %345 = vmatpush1.xpose.msra.mxu0 0.0
    %346 = vmatprep.subr.mxu0 0.0
    %347 = vmatpush1.xpose.msra.mxu0 0.0
    %348 = vmatprep.subr.mxu0 0.0
    %349 = vmatpush1.xpose.msra.mxu0 0.0
    %350 = vmatprep.subr.mxu0 0.0
    %351 = vmatpush1.xpose.msra.mxu0 0.0
    %352 = vmatprep.subr.mxu0 0.0
    %353 = vmatpush1.xpose.msra.mxu0 0.0
    %354 = vmatprep.subr.mxu0 0.0
    %355 = vmatpush1.xpose.msra.mxu0 0.0
    %356 = vmatprep.subr.mxu0 0.0
    %357 = vmatpush1.xpose.msra.mxu0 0.0
    %358 = vmatprep.subr.mxu0 0.0
    %359 = vmatpush1.xpose.msra.mxu0 %v328
    %360 = vmatprep.subr.mxu0 0.0
    %361 = vmatpush1.xpose.msra.mxu0 %v325
    %362 = vmatprep.subr.mxu0 0.0
    %363 = vmatpush2.xpose.msra.mxu0 0.0
    %364 = vmatprep.subr.mxu0 0.0
    %365 = vmatpush2.xpose.msra.mxu0 0.0
    %366 = vmatprep.subr.mxu0 0.0
    %367 = vmatpush2.xpose.msra.mxu0 0.0
    %368 = vmatprep.subr.mxu0 0.0
    %369 = vmatpush2.xpose.msra.mxu0 0.0
    %370 = vmatprep.subr.mxu0 0.0
    %371 = vmatpush2.xpose.msra.mxu0 0.0
    %372 = vmatprep.subr.mxu0 0.0
    %373 = vmatpush2.xpose.msra.mxu0 0.0
    %374 = vmatprep.subr.mxu0 0.0
    %375 = vmatpush2.xpose.msra.mxu0 0.0
    %376 = vmatprep.subr.mxu0 0.0
    %377 = vmatpush2.xpose.msra.mxu0 0.0
    %378 = vmatprep.subr.mxu0 0.0
    %379 = vmatpush2.xpose.msra.mxu0 0.0
    %380 = vmatprep.subr.mxu0 0.0
    %381 = vmatpush2.xpose.msra.mxu0 0.0
    %382 = vmatprep.subr.mxu0 0.0
    %383 = vmatpush2.xpose.msra.mxu0 0.0
    %384 = vmatprep.subr.mxu0 0.0
    %385 = vmatpush2.xpose.msra.mxu0 0.0
    %386 = vmatprep.subr.mxu0 0.0
    %387 = vmatpush2.xpose.msra.mxu0 0.0
    %388 = vmatprep.subr.mxu0 0.0
    %389 = vmatpush2.xpose.msra.mxu0 0.0
    %390 = vmatprep.subr.mxu0 0.0
    %391 = vmatpush2.xpose.msra.mxu0 0.0
    %392 = vmatprep.subr.mxu0 0.0
    %393 = vmatpush2.xpose.msra.mxu0 0.0
    %394 = vmatprep.mubr.f32.mxu0 0.0
    %395 = vmatmul.mubr.f32.gmra.mxu0 %v322
    %v396 = vpop.f32.mrf.mxu0
    %v397 = vadd.f32 0.0, %v396
    %v398 = vpop.f32.mrf.mxu0
    %399 = vdwg.mxu0
    %v400 = vlaneseq
    %v401 = vshrl.u32 %v400, 7
    %v402 = vsub.s32 0, %v401
    %v403 = vrot.slane %v238, %v402
    %v404 = vmul.f32 %v313, %v403
    %v405 = vmul.f32 %v318, %v403
    %v406 = vsel %vm239, %v404, 0.0
    %407 = vadd.xlane.f32.xlu0 %v406
    %v408 = vpop.xlane.xlu0 %407
    %v409 = vsel %vm239, %v405, 0.0
    %410 = vadd.xlane.f32.xlu0 %v409
    %v411 = vpop.xlane.xlu0 %410
    %s412 = sld [smem:[#allocation2]]
    %v413 = vstv %s412
    %v414 = vsel %vm122, %v413, 0.0
    %v415 = vsel %vm123, %v413, 0.0
    %s416 = sld [smem:[#allocation2 + $0x1]]
    %v417 = vstv %s416
    %v418 = vsel %vm124, %v417, %v414
    %v419 = vsel %vm125, %v417, %v415
    %s420 = sld [smem:[#allocation2 + $0x2]]
    %v421 = vstv %s420
    %v422 = vsel %vm126, %v421, %v418
    %v423 = vsel %vm127, %v421, %v419
    %v424 = vlaneseq
    %v425 = vshrl.u32 %v424, 7
    %v426 = vsub.s32 0, %v425
    %v427 = vrot.slane %v397, %v426
    %v428 = vadd.f32 %v427, %v408
    %v429 = vadd.f32 %v427, %v411
    %v430 = vadd.f32 %v428, %v422
    %v431 = vadd.f32 %v429, %v423
    %vm432 = vcmp.ge.f32.partialorder %v430, 0.0
    %vm433 = vcmp.ge.f32.partialorder %v431, 0.0
    %v434 = vmul.f32 %v430, 0.2
    %v435 = vmul.f32 %v431, 0.2
    %v436 = vsel %vm432, %v430, %v434
    %v437 = vsel %vm433, %v431, %v435
    %v438 = vsel %vm120, %v436, -1e+09
    %v439 = vsel %vm121, %v437, -1e+09
    %vm440 = vcmask 130048
    %v441 = vsel %vm440, %v438, -inf
    %442 = vmax.xlane.f32.xlu0 %v441
    %v443 = vpop.xlane.xlu0 %442
    %v444 = vsel %vm440, %v439, -inf
    %445 = vmax.xlane.f32.xlu0 %v444
    %v446 = vpop.xlane.xlu0 %445
    %v447 = vsub.f32 %v438, %v443
    %v448 = vsub.f32 %v439, %v446
    %v449 = vmul.f32 %v447, 1.442695
    %v450 = vpow.pop %v449
    %v451 = vmul.f32 %v448, 1.442695
    %v452 = vpow.pop %v451
    %v453 = vsel %vm440, %v450, 0.0
    %454 = vadd.xlane.f32.xlu0 %v453
    %v455 = vpop.xlane.xlu0 %454
    %v456 = vsel %vm440, %v452, 0.0
    %457 = vadd.xlane.f32.xlu0 %v456
    %v458 = vpop.xlane.xlu0 %457
    %v459 = vrcp.pop %v455
    %v460 = vrcp.pop %v458
    %v461 = vmul.f32 %v450, %v459
    %v462 = vmul.f32 %v452, %v460
    %v464 = vsel %vm440, %v461, 0
    %v467 = vsel %vm440, %v462, 0
    %469 = vmatprep.subr.mxu0 0.0
    %470 = vmatpush1.msra.mxu0 0.0
    %471 = vmatprep.subr.mxu0 0.0
    %472 = vmatpush1.msra.mxu0 0.0
    %473 = vmatprep.subr.mxu0 0.0
    %474 = vmatpush1.msra.mxu0 0.0
    %475 = vmatprep.subr.mxu0 0.0
    %476 = vmatpush1.msra.mxu0 0.0
    %477 = vmatprep.subr.mxu0 0.0
    %478 = vmatpush1.msra.mxu0 0.0
    %479 = vmatprep.subr.mxu0 0.0
    %480 = vmatpush1.msra.mxu0 0.0
    %481 = vmatprep.subr.mxu0 0.0
    %482 = vmatpush1.msra.mxu0 0.0
    %483 = vmatprep.subr.mxu0 0.0
    %484 = vmatpush1.msra.mxu0 0.0
    %485 = vmatprep.subr.mxu0 0.0
    %486 = vmatpush1.msra.mxu0 0.0
    %487 = vmatprep.subr.mxu0 0.0
    %488 = vmatpush1.msra.mxu0 0.0
    %489 = vmatprep.subr.mxu0 0.0
    %490 = vmatpush1.msra.mxu0 0.0
    %491 = vmatprep.subr.mxu0 0.0
    %492 = vmatpush1.msra.mxu0 0.0
    %493 = vmatprep.subr.mxu0 0.0
    %494 = vmatpush1.msra.mxu0 0.0
    %495 = vmatprep.subr.mxu0 0.0
    %496 = vmatpush1.msra.mxu0 0.0
    %497 = vmatprep.subr.mxu0 0.0
    %498 = vmatpush1.msra.mxu0 %v318
    %499 = vmatprep.subr.mxu0 0.0
    %500 = vmatpush1.msra.mxu0 %v313
    %501 = vmatprep.subr.mxu0 0.0
    %502 = vmatpush2.msra.mxu0 0.0
    %503 = vmatprep.subr.mxu0 0.0
    %504 = vmatpush2.msra.mxu0 0.0
    %505 = vmatprep.subr.mxu0 0.0
    %506 = vmatpush2.msra.mxu0 0.0
    %507 = vmatprep.subr.mxu0 0.0
    %508 = vmatpush2.msra.mxu0 0.0
    %509 = vmatprep.subr.mxu0 0.0
    %510 = vmatpush2.msra.mxu0 0.0
    %511 = vmatprep.subr.mxu0 0.0
    %512 = vmatpush2.msra.mxu0 0.0
    %513 = vmatprep.subr.mxu0 0.0
    %514 = vmatpush2.msra.mxu0 0.0
    %515 = vmatprep.subr.mxu0 0.0
    %516 = vmatpush2.msra.mxu0 0.0
    %517 = vmatprep.subr.mxu0 0.0
    %518 = vmatpush2.msra.mxu0 0.0
    %519 = vmatprep.subr.mxu0 0.0
    %520 = vmatpush2.msra.mxu0 0.0
    %521 = vmatprep.subr.mxu0 0.0
    %522 = vmatpush2.msra.mxu0 0.0
    %523 = vmatprep.subr.mxu0 0.0
    %524 = vmatpush2.msra.mxu0 0.0
    %525 = vmatprep.subr.mxu0 0.0
    %526 = vmatpush2.msra.mxu0 0.0
    %527 = vmatprep.subr.mxu0 0.0
    %528 = vmatpush2.msra.mxu0 0.0
    %529 = vmatprep.subr.mxu0 0.0
    %530 = vmatpush2.msra.mxu0 0.0
    %531 = vmatprep.subr.mxu0 0.0
    %532 = vmatpush2.msra.mxu0 0.0
    %533 = vmatprep.mubr.f32.mxu0 0.0
    %534 = vmatmul.mubr.f32.gmra.mxu0 %v464
    %v535 = vpop.f32.mrf.mxu0
    %v536 = vadd.f32 0.0, %v535
    %v537 = vpop.f32.mrf.mxu0
    %538 = vmatprep.mubr.f32.mxu0 0.0
    %539 = vmatmul.mubr.f32.gmra.mxu0 %v467
    %v540 = vpop.f32.mrf.mxu0
    %v541 = vadd.f32 0.0, %v540
    %v542 = vpop.f32.mrf.mxu0
    %543 = vdwg.mxu0
    %vm544 = vcmp.gt.f32.partialorder %v536, 0.0
    %vm545 = vcmp.gt.f32.partialorder %v541, 0.0
    %v546 = vmin.f32 %v536, 0.0
    %v547 = vmin.f32 %v541, 0.0
    %v548 = vmul.f32 %v546, 1.442695
    %v549 = vpow.pop %v548
    %v550 = vmul.f32 %v547, 1.442695
    %v551 = vpow.pop %v550
    %v552 = vsub.f32 %v549, 1.0
    %v553 = vsub.f32 %v551, 1.0
    %v554 = vsel %vm544, %v536, %v552
    %v555 = vsel %vm545, %v541, %v553
    %v556 = vrot.slane %v237, 1
    %557 = vrot.lane.b32.xlu0 %v313, 96
    %v558 = vpop.permute.xlu0 %557
    %559 = vrot.lane.b32.xlu0 %v318, 96
    %v560 = vpop.permute.xlu0 %559
    %v561 = vsel %vm239, %v556, 0
    %v563 = vsel %vm239, %v558, 0
    %v565 = vsel %vm239, %v560, 0
    %567 = vmatprep.subr.mxu0 0.0
    %568 = vmatpush1.xpose.msra.mxu0 0.0
    %569 = vmatprep.subr.mxu0 0.0
    %570 = vmatpush1.xpose.msra.mxu0 0.0
    %571 = vmatprep.subr.mxu0 0.0
    %572 = vmatpush1.xpose.msra.mxu0 0.0
    %573 = vmatprep.subr.mxu0 0.0
    %574 = vmatpush1.xpose.msra.mxu0 0.0
    %575 = vmatprep.subr.mxu0 0.0
    %576 = vmatpush1.xpose.msra.mxu0 0.0
    %577 = vmatprep.subr.mxu0 0.0
    %578 = vmatpush1.xpose.msra.mxu0 0.0
    %579 = vmatprep.subr.mxu0 0.0
    %580 = vmatpush1.xpose.msra.mxu0 0.0
    %581 = vmatprep.subr.mxu0 0.0
    %582 = vmatpush1.xpose.msra.mxu0 0.0
    %583 = vmatprep.subr.mxu0 0.0
    %584 = vmatpush1.xpose.msra.mxu0 0.0
    %585 = vmatprep.subr.mxu0 0.0
    %586 = vmatpush1.xpose.msra.mxu0 0.0
    %587 = vmatprep.subr.mxu0 0.0
    %588 = vmatpush1.xpose.msra.mxu0 0.0
    %589 = vmatprep.subr.mxu0 0.0
    %590 = vmatpush1.xpose.msra.mxu0 0.0
    %591 = vmatprep.subr.mxu0 0.0
    %592 = vmatpush1.xpose.msra.mxu0 0.0
    %593 = vmatprep.subr.mxu0 0.0
    %594 = vmatpush1.xpose.msra.mxu0 0.0
    %595 = vmatprep.subr.mxu0 0.0
    %596 = vmatpush1.xpose.msra.mxu0 %v565
    %597 = vmatprep.subr.mxu0 0.0
    %598 = vmatpush1.xpose.msra.mxu0 %v563
    %599 = vmatprep.subr.mxu0 0.0
    %600 = vmatpush2.xpose.msra.mxu0 0.0
    %601 = vmatprep.subr.mxu0 0.0
    %602 = vmatpush2.xpose.msra.mxu0 0.0
    %603 = vmatprep.subr.mxu0 0.0
    %604 = vmatpush2.xpose.msra.mxu0 0.0
    %605 = vmatprep.subr.mxu0 0.0
    %606 = vmatpush2.xpose.msra.mxu0 0.0
    %607 = vmatprep.subr.mxu0 0.0
    %608 = vmatpush2.xpose.msra.mxu0 0.0
    %609 = vmatprep.subr.mxu0 0.0
    %610 = vmatpush2.xpose.msra.mxu0 0.0
    %611 = vmatprep.subr.mxu0 0.0
    %612 = vmatpush2.xpose.msra.mxu0 0.0
    %613 = vmatprep.subr.mxu0 0.0
    %614 = vmatpush2.xpose.msra.mxu0 0.0
    %615 = vmatprep.subr.mxu0 0.0
    %616 = vmatpush2.xpose.msra.mxu0 0.0
    %617 = vmatprep.subr.mxu0 0.0
    %618 = vmatpush2.xpose.msra.mxu0 0.0
    %619 = vmatprep.subr.mxu0 0.0
    %620 = vmatpush2.xpose.msra.mxu0 0.0
    %621 = vmatprep.subr.mxu0 0.0
    %622 = vmatpush2.xpose.msra.mxu0 0.0
    %623 = vmatprep.subr.mxu0 0.0
    %624 = vmatpush2.xpose.msra.mxu0 0.0
    %625 = vmatprep.subr.mxu0 0.0
    %626 = vmatpush2.xpose.msra.mxu0 0.0
    %627 = vmatprep.subr.mxu0 0.0
    %628 = vmatpush2.xpose.msra.mxu0 0.0
    %629 = vmatprep.subr.mxu0 0.0
    %630 = vmatpush2.xpose.msra.mxu0 0.0
    %631 = vmatprep.mubr.f32.mxu0 0.0
    %632 = vmatmul.mubr.f32.gmra.mxu0 %v561
    %v633 = vpop.f32.mrf.mxu0
    %v634 = vadd.f32 0.0, %v633
    %v635 = vpop.f32.mrf.mxu0
    %636 = vdwg.mxu0
    %v637 = vlaneseq
    %v638 = vshrl.u32 %v637, 7
    %v639 = vsub.s32 1, %v638
    %v640 = vrot.slane %v238, %v639
    %642 = vrot.lane.b32.xlu0 %v640, 32
    %v643 = vpop.permute.xlu0 %642
    %v645 = vmul.f32 %v313, %v643
    %v646 = vmul.f32 %v318, %v643
    %649 = vrot.lane.b32.xlu0 %v645, 96
    %v650 = vpop.permute.xlu0 %649
    %651 = vrot.lane.b32.xlu0 %v646, 96
    %v652 = vpop.permute.xlu0 %651
    %v655 = vsel %vm239, %v650, 0.0
    %656 = vadd.xlane.f32.xlu0 %v655
    %v657 = vpop.xlane.xlu0 %656
    %v658 = vsel %vm239, %v652, 0.0
    %659 = vadd.xlane.f32.xlu0 %v658
    %v660 = vpop.xlane.xlu0 %659
    %s661 = sld [smem:[#allocation2 + $0x3]]
    %v662 = vstv %s661
    %v663 = vsel %vm122, %v662, 0.0
    %v664 = vsel %vm123, %v662, 0.0
    %s665 = sld [smem:[#allocation2 + $0x4]]
    %v666 = vstv %s665
    %v667 = vsel %vm124, %v666, %v663
    %v668 = vsel %vm125, %v666, %v664
    %s669 = sld [smem:[#allocation2 + $0x5]]
    %v670 = vstv %s669
    %v671 = vsel %vm126, %v670, %v667
    %v672 = vsel %vm127, %v670, %v668
    %v673 = vlaneseq
    %v674 = vshrl.u32 %v673, 7
    %v675 = vsub.s32 0, %v674
    %v676 = vrot.slane %v634, %v675
    %v677 = vadd.f32 %v676, %v657
    %v678 = vadd.f32 %v676, %v660
    %v679 = vadd.f32 %v677, %v671
    %v680 = vadd.f32 %v678, %v672
    %vm681 = vcmp.ge.f32.partialorder %v679, 0.0
    %vm682 = vcmp.ge.f32.partialorder %v680, 0.0
    %v683 = vmul.f32 %v679, 0.2
    %v684 = vmul.f32 %v680, 0.2
    %v685 = vsel %vm681, %v679, %v683
    %v686 = vsel %vm682, %v680, %v684
    %v687 = vsel %vm120, %v685, -1e+09
    %v688 = vsel %vm121, %v686, -1e+09
    %v689 = vsel %vm440, %v687, -inf
    %690 = vmax.xlane.f32.xlu0 %v689
    %v691 = vpop.xlane.xlu0 %690
    %v692 = vsel %vm440, %v688, -inf
    %693 = vmax.xlane.f32.xlu0 %v692
    %v694 = vpop.xlane.xlu0 %693
    %v695 = vsub.f32 %v687, %v691
    %v696 = vsub.f32 %v688, %v694
    %v697 = vmul.f32 %v695, 1.442695
    %v698 = vpow.pop %v697
    %v699 = vmul.f32 %v696, 1.442695
    %v700 = vpow.pop %v699
    %v701 = vsel %vm440, %v698, 0.0
    %702 = vadd.xlane.f32.xlu0 %v701
    %v703 = vpop.xlane.xlu0 %702
    %v704 = vsel %vm440, %v700, 0.0
    %705 = vadd.xlane.f32.xlu0 %v704
    %v706 = vpop.xlane.xlu0 %705
    %v707 = vrcp.pop %v703
    %v708 = vrcp.pop %v706
    %v709 = vmul.f32 %v698, %v707
    %v710 = vmul.f32 %v700, %v708
    %v714 = vsel %vm440, %v709, 0
    %v717 = vsel %vm440, %v710, 0
    %719 = vmatprep.subr.mxu0 0.0
    %720 = vmatpush1.msra.mxu0 0.0
    %721 = vmatprep.subr.mxu0 0.0
    %722 = vmatpush1.msra.mxu0 0.0
    %723 = vmatprep.subr.mxu0 0.0
    %724 = vmatpush1.msra.mxu0 0.0
    %725 = vmatprep.subr.mxu0 0.0
    %726 = vmatpush1.msra.mxu0 0.0
    %727 = vmatprep.subr.mxu0 0.0
    %728 = vmatpush1.msra.mxu0 0.0
    %729 = vmatprep.subr.mxu0 0.0
    %730 = vmatpush1.msra.mxu0 0.0
    %731 = vmatprep.subr.mxu0 0.0
    %732 = vmatpush1.msra.mxu0 0.0
    %733 = vmatprep.subr.mxu0 0.0
    %734 = vmatpush1.msra.mxu0 0.0
    %735 = vmatprep.subr.mxu0 0.0
    %736 = vmatpush1.msra.mxu0 0.0
    %737 = vmatprep.subr.mxu0 0.0
    %738 = vmatpush1.msra.mxu0 0.0
    %739 = vmatprep.subr.mxu0 0.0
    %740 = vmatpush1.msra.mxu0 0.0
    %741 = vmatprep.subr.mxu0 0.0
    %742 = vmatpush1.msra.mxu0 0.0
    %743 = vmatprep.subr.mxu0 0.0
    %744 = vmatpush1.msra.mxu0 0.0
    %745 = vmatprep.subr.mxu0 0.0
    %746 = vmatpush1.msra.mxu0 0.0
    %747 = vmatprep.subr.mxu0 0.0
    %748 = vmatpush1.msra.mxu0 %v560
    %749 = vmatprep.subr.mxu0 0.0
    %750 = vmatpush1.msra.mxu0 %v558
    %751 = vmatprep.subr.mxu0 0.0
    %752 = vmatpush2.msra.mxu0 0.0
    %753 = vmatprep.subr.mxu0 0.0
    %754 = vmatpush2.msra.mxu0 0.0
    %755 = vmatprep.subr.mxu0 0.0
    %756 = vmatpush2.msra.mxu0 0.0
    %757 = vmatprep.subr.mxu0 0.0
    %758 = vmatpush2.msra.mxu0 0.0
    %759 = vmatprep.subr.mxu0 0.0
    %760 = vmatpush2.msra.mxu0 0.0
    %761 = vmatprep.subr.mxu0 0.0
    %762 = vmatpush2.msra.mxu0 0.0
    %763 = vmatprep.subr.mxu0 0.0
    %764 = vmatpush2.msra.mxu0 0.0
    %765 = vmatprep.subr.mxu0 0.0
    %766 = vmatpush2.msra.mxu0 0.0
    %767 = vmatprep.subr.mxu0 0.0
    %768 = vmatpush2.msra.mxu0 0.0
    %769 = vmatprep.subr.mxu0 0.0
    %770 = vmatpush2.msra.mxu0 0.0
    %771 = vmatprep.subr.mxu0 0.0
    %772 = vmatpush2.msra.mxu0 0.0
    %773 = vmatprep.subr.mxu0 0.0
    %774 = vmatpush2.msra.mxu0 0.0
    %775 = vmatprep.subr.mxu0 0.0
    %776 = vmatpush2.msra.mxu0 0.0
    %777 = vmatprep.subr.mxu0 0.0
    %778 = vmatpush2.msra.mxu0 0.0
    %779 = vmatprep.subr.mxu0 0.0
    %780 = vmatpush2.msra.mxu0 0.0
    %781 = vmatprep.subr.mxu0 0.0
    %782 = vmatpush2.msra.mxu0 0.0
    %783 = vmatprep.mubr.f32.mxu0 0.0
    %784 = vmatmul.mubr.f32.gmra.mxu0 %v714
    %v785 = vpop.f32.mrf.mxu0
    %v786 = vadd.f32 0.0, %v785
    %v787 = vpop.f32.mrf.mxu0
    %788 = vmatprep.mubr.f32.mxu0 0.0
    %789 = vmatmul.mubr.f32.gmra.mxu0 %v717
    %v790 = vpop.f32.mrf.mxu0
    %v791 = vadd.f32 0.0, %v790
    %v792 = vpop.f32.mrf.mxu0
    %793 = vdwg.mxu0
    %vm794 = vcmp.gt.f32.partialorder %v786, 0.0
    %vm795 = vcmp.gt.f32.partialorder %v791, 0.0
    %v796 = vmin.f32 %v786, 0.0
    %v797 = vmin.f32 %v791, 0.0
    %v798 = vmul.f32 %v796, 1.442695
    %v799 = vpow.pop %v798
    %v800 = vmul.f32 %v797, 1.442695
    %v801 = vpow.pop %v800
    %v802 = vsub.f32 %v799, 1.0
    %v803 = vsub.f32 %v801, 1.0
    %v804 = vsel %vm794, %v786, %v802
    %v805 = vsel %vm795, %v791, %v803
    %v806 = vld [vmem:[%s8] sm:$0xff]
    %v807 = vld [vmem:[%s8 + $0x8] sm:$0xff]
    %v808 = vld [vmem:[%s8 + $0x10] sm:$0xff]
    %v809 = vld [vmem:[%s8 + $0x18] sm:$0xff]
    %v810 = vld [vmem:[%s8 + $0x20] sm:$0xff]
    %v811 = vld [vmem:[%s8 + $0x28] sm:$0xff]
    %v812 = vld [vmem:[%s8 + $0x30] sm:$0xff]
    %v813 = vld [vmem:[%s8 + $0x38] sm:$0xff]
    %v814 = vld [vmem:[%s9] sm:$0x3]
    %v815 = vld [vmem:[%s10] sm:$0x3]
    %v817 = vsel %vm239, %v804, 0
    %v820 = vsel %vm239, %v805, 0
    %822 = vmatprep.subr.mxu0 0.0
    %823 = vmatpush1.msra.mxu0 0.0
    %824 = vmatprep.subr.mxu0 0.0
    %825 = vmatpush1.msra.mxu0 0.0
    %826 = vmatprep.subr.mxu0 0.0
    %827 = vmatpush1.msra.mxu0 0.0
    %828 = vmatprep.subr.mxu0 0.0
    %829 = vmatpush1.msra.mxu0 0.0
    %830 = vmatprep.subr.mxu0 0.0
    %831 = vmatpush1.msra.mxu0 0.0
    %832 = vmatprep.subr.mxu0 0.0
    %833 = vmatpush1.msra.mxu0 0.0
    %834 = vmatprep.subr.mxu0 0.0
    %835 = vmatpush1.msra.mxu0 0.0
    %836 = vmatprep.subr.mxu0 0.0
    %837 = vmatpush1.msra.mxu0 0.0
    %838 = vmatprep.subr.mxu0 0.0
    %839 = vmatpush1.msra.mxu0 0.0
    %840 = vmatprep.subr.mxu0 0.0
    %841 = vmatpush1.msra.mxu0 0.0
    %842 = vmatprep.subr.mxu0 0.0
    %843 = vmatpush1.msra.mxu0 0.0
    %844 = vmatprep.subr.mxu0 0.0
    %845 = vmatpush1.msra.mxu0 0.0
    %846 = vmatprep.subr.mxu0 0.0
    %847 = vmatpush1.msra.mxu0 %v813
    %848 = vmatprep.subr.mxu0 0.0
    %849 = vmatpush1.msra.mxu0 %v812
    %850 = vmatprep.subr.mxu0 0.0
    %851 = vmatpush1.msra.mxu0 %v811
    %852 = vmatprep.subr.mxu0 0.0
    %853 = vmatpush1.msra.mxu0 %v810
    %854 = vmatprep.subr.mxu0 0.0
    %855 = vmatpush2.msra.mxu0 0.0
    %856 = vmatprep.subr.mxu0 0.0
    %857 = vmatpush2.msra.mxu0 0.0
    %858 = vmatprep.subr.mxu0 0.0
    %859 = vmatpush2.msra.mxu0 0.0
    %860 = vmatprep.subr.mxu0 0.0
    %861 = vmatpush2.msra.mxu0 0.0
    %862 = vmatprep.subr.mxu0 0.0
    %863 = vmatpush2.msra.mxu0 0.0
    %864 = vmatprep.subr.mxu0 0.0
    %865 = vmatpush2.msra.mxu0 0.0
    %866 = vmatprep.subr.mxu0 0.0
    %867 = vmatpush2.msra.mxu0 0.0
    %868 = vmatprep.subr.mxu0 0.0
    %869 = vmatpush2.msra.mxu0 0.0
    %870 = vmatprep.subr.mxu0 0.0
    %871 = vmatpush2.msra.mxu0 0.0
    %872 = vmatprep.subr.mxu0 0.0
    %873 = vmatpush2.msra.mxu0 0.0
    %874 = vmatprep.subr.mxu0 0.0
    %875 = vmatpush2.msra.mxu0 0.0
    %876 = vmatprep.subr.mxu0 0.0
    %877 = vmatpush2.msra.mxu0 0.0
    %878 = vmatprep.subr.mxu0 0.0
    %879 = vmatpush2.msra.mxu0 0.0
    %880 = vmatprep.subr.mxu0 0.0
    %881 = vmatpush2.msra.mxu0 0.0
    %882 = vmatprep.subr.mxu0 0.0
    %883 = vmatpush2.msra.mxu0 0.0
    %884 = vmatprep.subr.mxu0 0.0
    %885 = vmatpush2.msra.mxu0 0.0
    %886 = vmatprep.mubr.f32.mxu0 0.0
    %887 = vmatmul.mubr.f32.gmra.mxu0 %v817
    %v888 = vpop.f32.mrf.mxu0
    %v889 = vadd.f32 0.0, %v888
    %v890 = vpop.f32.mrf.mxu0
    %891 = vmatprep.mubr.f32.mxu0 0.0
    %892 = vmatmul.mubr.f32.gmra.mxu0 %v820
    %v893 = vpop.f32.mrf.mxu0
    %v894 = vadd.f32 0.0, %v893
    %v895 = vpop.f32.mrf.mxu0
    %896 = vdwg.mxu0
    %v898 = vsel %vm239, %v554, 0
    %v901 = vsel %vm239, %v555, 0
    %903 = vmatprep.subr.mxu0 0.0
    %904 = vmatpush1.msra.mxu0 0.0
    %905 = vmatprep.subr.mxu0 0.0
    %906 = vmatpush1.msra.mxu0 0.0
    %907 = vmatprep.subr.mxu0 0.0
    %908 = vmatpush1.msra.mxu0 0.0
    %909 = vmatprep.subr.mxu0 0.0
    %910 = vmatpush1.msra.mxu0 0.0
    %911 = vmatprep.subr.mxu0 0.0
    %912 = vmatpush1.msra.mxu0 0.0
    %913 = vmatprep.subr.mxu0 0.0
    %914 = vmatpush1.msra.mxu0 0.0
    %915 = vmatprep.subr.mxu0 0.0
    %916 = vmatpush1.msra.mxu0 0.0
    %917 = vmatprep.subr.mxu0 0.0
    %918 = vmatpush1.msra.mxu0 0.0
    %919 = vmatprep.subr.mxu0 0.0
    %920 = vmatpush1.msra.mxu0 0.0
    %921 = vmatprep.subr.mxu0 0.0
    %922 = vmatpush1.msra.mxu0 0.0
    %923 = vmatprep.subr.mxu0 0.0
    %924 = vmatpush1.msra.mxu0 0.0
    %925 = vmatprep.subr.mxu0 0.0
    %926 = vmatpush1.msra.mxu0 0.0
    %927 = vmatprep.subr.mxu0 0.0
    %928 = vmatpush1.msra.mxu0 %v809
    %929 = vmatprep.subr.mxu0 0.0
    %930 = vmatpush1.msra.mxu0 %v808
    %931 = vmatprep.subr.mxu0 0.0
    %932 = vmatpush1.msra.mxu0 %v807
    %933 = vmatprep.subr.mxu0 0.0
    %934 = vmatpush1.msra.mxu0 %v806
    %935 = vmatprep.subr.mxu0 0.0
    %936 = vmatpush2.msra.mxu0 0.0
    %937 = vmatprep.subr.mxu0 0.0
    %938 = vmatpush2.msra.mxu0 0.0
    %939 = vmatprep.subr.mxu0 0.0
    %940 = vmatpush2.msra.mxu0 0.0
    %941 = vmatprep.subr.mxu0 0.0
    %942 = vmatpush2.msra.mxu0 0.0
    %943 = vmatprep.subr.mxu0 0.0
    %944 = vmatpush2.msra.mxu0 0.0
    %945 = vmatprep.subr.mxu0 0.0
    %946 = vmatpush2.msra.mxu0 0.0
    %947 = vmatprep.subr.mxu0 0.0
    %948 = vmatpush2.msra.mxu0 0.0
    %949 = vmatprep.subr.mxu0 0.0
    %950 = vmatpush2.msra.mxu0 0.0
    %951 = vmatprep.subr.mxu0 0.0
    %952 = vmatpush2.msra.mxu0 0.0
    %953 = vmatprep.subr.mxu0 0.0
    %954 = vmatpush2.msra.mxu0 0.0
    %955 = vmatprep.subr.mxu0 0.0
    %956 = vmatpush2.msra.mxu0 0.0
    %957 = vmatprep.subr.mxu0 0.0
    %958 = vmatpush2.msra.mxu0 0.0
    %959 = vmatprep.subr.mxu0 0.0
    %960 = vmatpush2.msra.mxu0 0.0
    %961 = vmatprep.subr.mxu0 0.0
    %962 = vmatpush2.msra.mxu0 0.0
    %963 = vmatprep.subr.mxu0 0.0
    %964 = vmatpush2.msra.mxu0 0.0
    %965 = vmatprep.subr.mxu0 0.0
    %966 = vmatpush2.msra.mxu0 0.0
    %967 = vmatprep.mubr.f32.mxu0 0.0
    %968 = vmatmul.mubr.f32.gmra.mxu0 %v898
    %v969 = vpop.f32.mrf.mxu0
    %v970 = vadd.f32 %v889, %v969
    %v971 = vpop.f32.mrf.mxu0
    %972 = vmatprep.mubr.f32.mxu0 0.0
    %973 = vmatmul.mubr.f32.gmra.mxu0 %v901
    %v974 = vpop.f32.mrf.mxu0
    %v975 = vadd.f32 %v894, %v974
    %v976 = vpop.f32.mrf.mxu0
    %977 = vdwg.mxu0
    %v979 = vsel %vm239, %v814, 0
    %v982 = vsel %vm239, %v970, 0
    %v985 = vsel %vm239, %v975, 0
    %987 = vmatprep.subr.mxu0 0.0
    %988 = vmatpush1.xpose.msra.mxu0 0.0
    %989 = vmatprep.subr.mxu0 0.0
    %990 = vmatpush1.xpose.msra.mxu0 0.0
    %991 = vmatprep.subr.mxu0 0.0
    %992 = vmatpush1.xpose.msra.mxu0 0.0
    %993 = vmatprep.subr.mxu0 0.0
    %994 = vmatpush1.xpose.msra.mxu0 0.0
    %995 = vmatprep.subr.mxu0 0.0
    %996 = vmatpush1.xpose.msra.mxu0 0.0
    %997 = vmatprep.subr.mxu0 0.0
    %998 = vmatpush1.xpose.msra.mxu0 0.0
    %999 = vmatprep.subr.mxu0 0.0
    %1000 = vmatpush1.xpose.msra.mxu0 0.0
    %1001 = vmatprep.subr.mxu0 0.0
    %1002 = vmatpush1.xpose.msra.mxu0 0.0
    %1003 = vmatprep.subr.mxu0 0.0
    %1004 = vmatpush1.xpose.msra.mxu0 0.0
    %1005 = vmatprep.subr.mxu0 0.0
    %1006 = vmatpush1.xpose.msra.mxu0 0.0
    %1007 = vmatprep.subr.mxu0 0.0
    %1008 = vmatpush1.xpose.msra.mxu0 0.0
    %1009 = vmatprep.subr.mxu0 0.0
    %1010 = vmatpush1.xpose.msra.mxu0 0.0
    %1011 = vmatprep.subr.mxu0 0.0
    %1012 = vmatpush1.xpose.msra.mxu0 0.0
    %1013 = vmatprep.subr.mxu0 0.0
    %1014 = vmatpush1.xpose.msra.mxu0 0.0
    %1015 = vmatprep.subr.mxu0 0.0
    %1016 = vmatpush1.xpose.msra.mxu0 %v985
    %1017 = vmatprep.subr.mxu0 0.0
    %1018 = vmatpush1.xpose.msra.mxu0 %v982
    %1019 = vmatprep.subr.mxu0 0.0
    %1020 = vmatpush2.xpose.msra.mxu0 0.0
    %1021 = vmatprep.subr.mxu0 0.0
    %1022 = vmatpush2.xpose.msra.mxu0 0.0
    %1023 = vmatprep.subr.mxu0 0.0
    %1024 = vmatpush2.xpose.msra.mxu0 0.0
    %1025 = vmatprep.subr.mxu0 0.0
    %1026 = vmatpush2.xpose.msra.mxu0 0.0
    %1027 = vmatprep.subr.mxu0 0.0
    %1028 = vmatpush2.xpose.msra.mxu0 0.0
    %1029 = vmatprep.subr.mxu0 0.0
    %1030 = vmatpush2.xpose.msra.mxu0 0.0
    %1031 = vmatprep.subr.mxu0 0.0
    %1032 = vmatpush2.xpose.msra.mxu0 0.0
    %1033 = vmatprep.subr.mxu0 0.0
    %1034 = vmatpush2.xpose.msra.mxu0 0.0
    %1035 = vmatprep.subr.mxu0 0.0
    %1036 = vmatpush2.xpose.msra.mxu0 0.0
    %1037 = vmatprep.subr.mxu0 0.0
    %1038 = vmatpush2.xpose.msra.mxu0 0.0
    %1039 = vmatprep.subr.mxu0 0.0
    %1040 = vmatpush2.xpose.msra.mxu0 0.0
    %1041 = vmatprep.subr.mxu0 0.0
    %1042 = vmatpush2.xpose.msra.mxu0 0.0
    %1043 = vmatprep.subr.mxu0 0.0
    %1044 = vmatpush2.xpose.msra.mxu0 0.0
    %1045 = vmatprep.subr.mxu0 0.0
    %1046 = vmatpush2.xpose.msra.mxu0 0.0
    %1047 = vmatprep.subr.mxu0 0.0
    %1048 = vmatpush2.xpose.msra.mxu0 0.0
    %1049 = vmatprep.subr.mxu0 0.0
    %1050 = vmatpush2.xpose.msra.mxu0 0.0
    %1051 = vmatprep.mubr.f32.mxu0 0.0
    %1052 = vmatmul.mubr.f32.gmra.mxu0 %v979
    %v1053 = vpop.f32.mrf.mxu0
    %v1054 = vadd.f32 0.0, %v1053
    %v1055 = vpop.f32.mrf.mxu0
    %1056 = vdwg.mxu0
    %v1057 = vlaneseq
    %v1058 = vshrl.u32 %v1057, 7
    %v1059 = vsub.s32 0, %v1058
    %v1060 = vrot.slane %v815, %v1059
    %v1061 = vmul.f32 %v970, %v1060
    %v1062 = vmul.f32 %v975, %v1060
    %v1063 = vsel %vm239, %v1061, 0.0
    %1064 = vadd.xlane.f32.xlu0 %v1063
    %v1065 = vpop.xlane.xlu0 %1064
    %v1066 = vsel %vm239, %v1062, 0.0
    %1067 = vadd.xlane.f32.xlu0 %v1066
    %v1068 = vpop.xlane.xlu0 %1067
    %s1069 = sld [smem:[#allocation5]]
    %v1070 = vstv %s1069
    %v1071 = vsel %vm122, %v1070, 0.0
    %v1072 = vsel %vm123, %v1070, 0.0
    %s1073 = sld [smem:[#allocation5 + $0x1]]
    %v1074 = vstv %s1073
    %v1075 = vsel %vm124, %v1074, %v1071
    %v1076 = vsel %vm125, %v1074, %v1072
    %s1077 = sld [smem:[#allocation5 + $0x2]]
    %v1078 = vstv %s1077
    %v1079 = vsel %vm126, %v1078, %v1075
    %v1080 = vsel %vm127, %v1078, %v1076
    %v1081 = vlaneseq
    %v1082 = vshrl.u32 %v1081, 7
    %v1083 = vsub.s32 0, %v1082
    %v1084 = vrot.slane %v1054, %v1083
    %v1085 = vadd.f32 %v1084, %v1065
    %v1086 = vadd.f32 %v1084, %v1068
    %v1087 = vadd.f32 %v1085, %v1079
    %v1088 = vadd.f32 %v1086, %v1080
    %vm1089 = vcmp.ge.f32.partialorder %v1087, 0.0
    %vm1090 = vcmp.ge.f32.partialorder %v1088, 0.0
    %v1091 = vmul.f32 %v1087, 0.2
    %v1092 = vmul.f32 %v1088, 0.2
    %v1093 = vsel %vm1089, %v1087, %v1091
    %v1094 = vsel %vm1090, %v1088, %v1092
    %v1095 = vsel %vm120, %v1093, -1e+09
    %v1096 = vsel %vm121, %v1094, -1e+09
    %v1097 = vsel %vm440, %v1095, -inf
    %1098 = vmax.xlane.f32.xlu0 %v1097
    %v1099 = vpop.xlane.xlu0 %1098
    %v1100 = vsel %vm440, %v1096, -inf
    %1101 = vmax.xlane.f32.xlu0 %v1100
    %v1102 = vpop.xlane.xlu0 %1101
    %v1103 = vsub.f32 %v1095, %v1099
    %v1104 = vsub.f32 %v1096, %v1102
    %v1105 = vmul.f32 %v1103, 1.442695
    %v1106 = vpow.pop %v1105
    %v1107 = vmul.f32 %v1104, 1.442695
    %v1108 = vpow.pop %v1107
    %v1109 = vsel %vm440, %v1106, 0.0
    %1110 = vadd.xlane.f32.xlu0 %v1109
    %v1111 = vpop.xlane.xlu0 %1110
    %v1112 = vsel %vm440, %v1108, 0.0
    %1113 = vadd.xlane.f32.xlu0 %v1112
    %v1114 = vpop.xlane.xlu0 %1113
    %v1115 = vrcp.pop %v1111
    %v1116 = vrcp.pop %v1114
    %v1117 = vmul.f32 %v1106, %v1115
    %v1118 = vmul.f32 %v1108, %v1116
    %v1119 = vmul.f32 %v1117, 0.95
    %v1120 = vmul.f32 %v1118, 0.95
    %v1121 = vmul.f32 %v461, 0.05
    %v1122 = vmul.f32 %v462, 0.05
    %v1123 = vadd.f32 %v1119, %v1121
    %v1124 = vadd.f32 %v1120, %v1122
    %1125 = vrot.lane.b32.xlu0 %v970, 64
    %v1126 = vpop.permute.xlu0 %1125
    %1127 = vrot.lane.b32.xlu0 %v975, 64
    %v1128 = vpop.permute.xlu0 %1127
    %v1132 = vsel %vm440, %v1123, 0
    %v1135 = vsel %vm440, %v1124, 0
    %1137 = vmatprep.subr.mxu0 0.0
    %1138 = vmatpush1.msra.mxu0 0.0
    %1139 = vmatprep.subr.mxu0 0.0
    %1140 = vmatpush1.msra.mxu0 0.0
    %1141 = vmatprep.subr.mxu0 0.0
    %1142 = vmatpush1.msra.mxu0 0.0
    %1143 = vmatprep.subr.mxu0 0.0
    %1144 = vmatpush1.msra.mxu0 0.0
    %1145 = vmatprep.subr.mxu0 0.0
    %1146 = vmatpush1.msra.mxu0 0.0
    %1147 = vmatprep.subr.mxu0 0.0
    %1148 = vmatpush1.msra.mxu0 0.0
    %1149 = vmatprep.subr.mxu0 0.0
    %1150 = vmatpush1.msra.mxu0 0.0
    %1151 = vmatprep.subr.mxu0 0.0
    %1152 = vmatpush1.msra.mxu0 0.0
    %1153 = vmatprep.subr.mxu0 0.0
    %1154 = vmatpush1.msra.mxu0 0.0
    %1155 = vmatprep.subr.mxu0 0.0
    %1156 = vmatpush1.msra.mxu0 0.0
    %1157 = vmatprep.subr.mxu0 0.0
    %1158 = vmatpush1.msra.mxu0 0.0
    %1159 = vmatprep.subr.mxu0 0.0
    %1160 = vmatpush1.msra.mxu0 0.0
    %1161 = vmatprep.subr.mxu0 0.0
    %1162 = vmatpush1.msra.mxu0 0.0
    %1163 = vmatprep.subr.mxu0 0.0
    %1164 = vmatpush1.msra.mxu0 0.0
    %1165 = vmatprep.subr.mxu0 0.0
    %1166 = vmatpush1.msra.mxu0 %v975
    %1167 = vmatprep.subr.mxu0 0.0
    %1168 = vmatpush1.msra.mxu0 %v970
    %1169 = vmatprep.subr.mxu0 0.0
    %1170 = vmatpush2.msra.mxu0 0.0
    %1171 = vmatprep.subr.mxu0 0.0
    %1172 = vmatpush2.msra.mxu0 0.0
    %1173 = vmatprep.subr.mxu0 0.0
    %1174 = vmatpush2.msra.mxu0 0.0
    %1175 = vmatprep.subr.mxu0 0.0
    %1176 = vmatpush2.msra.mxu0 0.0
    %1177 = vmatprep.subr.mxu0 0.0
    %1178 = vmatpush2.msra.mxu0 0.0
    %1179 = vmatprep.subr.mxu0 0.0
    %1180 = vmatpush2.msra.mxu0 0.0
    %1181 = vmatprep.subr.mxu0 0.0
    %1182 = vmatpush2.msra.mxu0 0.0
    %1183 = vmatprep.subr.mxu0 0.0
    %1184 = vmatpush2.msra.mxu0 0.0
    %1185 = vmatprep.subr.mxu0 0.0
    %1186 = vmatpush2.msra.mxu0 0.0
    %1187 = vmatprep.subr.mxu0 0.0
    %1188 = vmatpush2.msra.mxu0 0.0
    %1189 = vmatprep.subr.mxu0 0.0
    %1190 = vmatpush2.msra.mxu0 0.0
    %1191 = vmatprep.subr.mxu0 0.0
    %1192 = vmatpush2.msra.mxu0 0.0
    %1193 = vmatprep.subr.mxu0 0.0
    %1194 = vmatpush2.msra.mxu0 0.0
    %1195 = vmatprep.subr.mxu0 0.0
    %1196 = vmatpush2.msra.mxu0 0.0
    %1197 = vmatprep.subr.mxu0 0.0
    %1198 = vmatpush2.msra.mxu0 0.0
    %1199 = vmatprep.subr.mxu0 0.0
    %1200 = vmatpush2.msra.mxu0 0.0
    %1201 = vmatprep.mubr.f32.mxu0 0.0
    %1202 = vmatmul.mubr.f32.gmra.mxu0 %v1132
    %v1203 = vpop.f32.mrf.mxu0
    %v1204 = vadd.f32 %v1126, %v1203
    %v1205 = vpop.f32.mrf.mxu0
    %1206 = vmatprep.mubr.f32.mxu0 0.0
    %1207 = vmatmul.mubr.f32.gmra.mxu0 %v1135
    %v1208 = vpop.f32.mrf.mxu0
    %v1209 = vadd.f32 %v1128, %v1208
    %v1210 = vpop.f32.mrf.mxu0
    %1211 = vdwg.mxu0
    %vm1212 = vcmp.gt.f32.partialorder %v1204, 0.0
    %vm1213 = vcmp.gt.f32.partialorder %v1209, 0.0
    %v1214 = vmin.f32 %v1204, 0.0
    %v1215 = vmin.f32 %v1209, 0.0
    %v1216 = vmul.f32 %v1214, 1.442695
    %v1217 = vpow.pop %v1216
    %v1218 = vmul.f32 %v1215, 1.442695
    %v1219 = vpow.pop %v1218
    %v1220 = vsub.f32 %v1217, 1.0
    %v1221 = vsub.f32 %v1219, 1.0
    %v1222 = vsel %vm1212, %v1204, %v1220
    %v1223 = vsel %vm1213, %v1209, %v1221
    %v1224 = vrot.slane %v814, 1
    %1225 = vrot.lane.b32.xlu0 %v970, 96
    %v1226 = vpop.permute.xlu0 %1225
    %1227 = vrot.lane.b32.xlu0 %v975, 96
    %v1228 = vpop.permute.xlu0 %1227
    %v1229 = vsel %vm239, %v1224, 0
    %v1231 = vsel %vm239, %v1226, 0
    %v1233 = vsel %vm239, %v1228, 0
    %1235 = vmatprep.subr.mxu0 0.0
    %1236 = vmatpush1.xpose.msra.mxu0 0.0
    %1237 = vmatprep.subr.mxu0 0.0
    %1238 = vmatpush1.xpose.msra.mxu0 0.0
    %1239 = vmatprep.subr.mxu0 0.0
    %1240 = vmatpush1.xpose.msra.mxu0 0.0
    %1241 = vmatprep.subr.mxu0 0.0
    %1242 = vmatpush1.xpose.msra.mxu0 0.0
    %1243 = vmatprep.subr.mxu0 0.0
    %1244 = vmatpush1.xpose.msra.mxu0 0.0
    %1245 = vmatprep.subr.mxu0 0.0
    %1246 = vmatpush1.xpose.msra.mxu0 0.0
    %1247 = vmatprep.subr.mxu0 0.0
    %1248 = vmatpush1.xpose.msra.mxu0 0.0
    %1249 = vmatprep.subr.mxu0 0.0
    %1250 = vmatpush1.xpose.msra.mxu0 0.0
    %1251 = vmatprep.subr.mxu0 0.0
    %1252 = vmatpush1.xpose.msra.mxu0 0.0
    %1253 = vmatprep.subr.mxu0 0.0
    %1254 = vmatpush1.xpose.msra.mxu0 0.0
    %1255 = vmatprep.subr.mxu0 0.0
    %1256 = vmatpush1.xpose.msra.mxu0 0.0
    %1257 = vmatprep.subr.mxu0 0.0
    %1258 = vmatpush1.xpose.msra.mxu0 0.0
    %1259 = vmatprep.subr.mxu0 0.0
    %1260 = vmatpush1.xpose.msra.mxu0 0.0
    %1261 = vmatprep.subr.mxu0 0.0
    %1262 = vmatpush1.xpose.msra.mxu0 0.0
    %1263 = vmatprep.subr.mxu0 0.0
    %1264 = vmatpush1.xpose.msra.mxu0 %v1233
    %1265 = vmatprep.subr.mxu0 0.0
    %1266 = vmatpush1.xpose.msra.mxu0 %v1231
    %1267 = vmatprep.subr.mxu0 0.0
    %1268 = vmatpush2.xpose.msra.mxu0 0.0
    %1269 = vmatprep.subr.mxu0 0.0
    %1270 = vmatpush2.xpose.msra.mxu0 0.0
    %1271 = vmatprep.subr.mxu0 0.0
    %1272 = vmatpush2.xpose.msra.mxu0 0.0
    %1273 = vmatprep.subr.mxu0 0.0
    %1274 = vmatpush2.xpose.msra.mxu0 0.0
    %1275 = vmatprep.subr.mxu0 0.0
    %1276 = vmatpush2.xpose.msra.mxu0 0.0
    %1277 = vmatprep.subr.mxu0 0.0
    %1278 = vmatpush2.xpose.msra.mxu0 0.0
    %1279 = vmatprep.subr.mxu0 0.0
    %1280 = vmatpush2.xpose.msra.mxu0 0.0
    %1281 = vmatprep.subr.mxu0 0.0
    %1282 = vmatpush2.xpose.msra.mxu0 0.0
    %1283 = vmatprep.subr.mxu0 0.0
    %1284 = vmatpush2.xpose.msra.mxu0 0.0
    %1285 = vmatprep.subr.mxu0 0.0
    %1286 = vmatpush2.xpose.msra.mxu0 0.0
    %1287 = vmatprep.subr.mxu0 0.0
    %1288 = vmatpush2.xpose.msra.mxu0 0.0
    %1289 = vmatprep.subr.mxu0 0.0
    %1290 = vmatpush2.xpose.msra.mxu0 0.0
    %1291 = vmatprep.subr.mxu0 0.0
    %1292 = vmatpush2.xpose.msra.mxu0 0.0
    %1293 = vmatprep.subr.mxu0 0.0
    %1294 = vmatpush2.xpose.msra.mxu0 0.0
    %1295 = vmatprep.subr.mxu0 0.0
    %1296 = vmatpush2.xpose.msra.mxu0 0.0
    %1297 = vmatprep.subr.mxu0 0.0
    %1298 = vmatpush2.xpose.msra.mxu0 0.0
    %1299 = vmatprep.mubr.f32.mxu0 0.0
    %1300 = vmatmul.mubr.f32.gmra.mxu0 %v1229
    %v1301 = vpop.f32.mrf.mxu0
    %v1302 = vadd.f32 0.0, %v1301
    %v1303 = vpop.f32.mrf.mxu0
    %1304 = vdwg.mxu0
    %v1305 = vlaneseq
    %v1306 = vshrl.u32 %v1305, 7
    %v1307 = vsub.s32 1, %v1306
    %v1308 = vrot.slane %v815, %v1307
    %1310 = vrot.lane.b32.xlu0 %v1308, 32
    %v1311 = vpop.permute.xlu0 %1310
    %v1313 = vmul.f32 %v970, %v1311
    %v1314 = vmul.f32 %v975, %v1311
    %1317 = vrot.lane.b32.xlu0 %v1313, 96
    %v1318 = vpop.permute.xlu0 %1317
    %1319 = vrot.lane.b32.xlu0 %v1314, 96
    %v1320 = vpop.permute.xlu0 %1319
    %v1323 = vsel %vm239, %v1318, 0.0
    %1324 = vadd.xlane.f32.xlu0 %v1323
    %v1325 = vpop.xlane.xlu0 %1324
    %v1326 = vsel %vm239, %v1320, 0.0
    %1327 = vadd.xlane.f32.xlu0 %v1326
    %v1328 = vpop.xlane.xlu0 %1327
    %s1329 = sld [smem:[#allocation5 + $0x3]]
    %v1330 = vstv %s1329
    %v1331 = vsel %vm122, %v1330, 0.0
    %v1332 = vsel %vm123, %v1330, 0.0
    %s1333 = sld [smem:[#allocation5 + $0x4]]
    %v1334 = vstv %s1333
    %v1335 = vsel %vm124, %v1334, %v1331
    %v1336 = vsel %vm125, %v1334, %v1332
    %s1337 = sld [smem:[#allocation5 + $0x5]]
    %v1338 = vstv %s1337
    %v1339 = vsel %vm126, %v1338, %v1335
    %v1340 = vsel %vm127, %v1338, %v1336
    %v1341 = vlaneseq
    %v1342 = vshrl.u32 %v1341, 7
    %v1343 = vsub.s32 0, %v1342
    %v1344 = vrot.slane %v1302, %v1343
    %v1345 = vadd.f32 %v1344, %v1325
    %v1346 = vadd.f32 %v1344, %v1328
    %v1347 = vadd.f32 %v1345, %v1339
    %v1348 = vadd.f32 %v1346, %v1340
    %vm1349 = vcmp.ge.f32.partialorder %v1347, 0.0
    %vm1350 = vcmp.ge.f32.partialorder %v1348, 0.0
    %v1351 = vmul.f32 %v1347, 0.2
    %v1352 = vmul.f32 %v1348, 0.2
    %v1353 = vsel %vm1349, %v1347, %v1351
    %v1354 = vsel %vm1350, %v1348, %v1352
    %v1355 = vsel %vm120, %v1353, -1e+09
    %v1356 = vsel %vm121, %v1354, -1e+09
    %v1357 = vsel %vm440, %v1355, -inf
    %1358 = vmax.xlane.f32.xlu0 %v1357
    %v1359 = vpop.xlane.xlu0 %1358
    %v1360 = vsel %vm440, %v1356, -inf
    %1361 = vmax.xlane.f32.xlu0 %v1360
    %v1362 = vpop.xlane.xlu0 %1361
    %v1363 = vsub.f32 %v1355, %v1359
    %v1364 = vsub.f32 %v1356, %v1362
    %v1365 = vmul.f32 %v1363, 1.442695
    %v1366 = vpow.pop %v1365
    %v1367 = vmul.f32 %v1364, 1.442695
    %v1368 = vpow.pop %v1367
    %v1369 = vsel %vm440, %v1366, 0.0
    %1370 = vadd.xlane.f32.xlu0 %v1369
    %v1371 = vpop.xlane.xlu0 %1370
    %v1372 = vsel %vm440, %v1368, 0.0
    %1373 = vadd.xlane.f32.xlu0 %v1372
    %v1374 = vpop.xlane.xlu0 %1373
    %v1375 = vrcp.pop %v1371
    %v1376 = vrcp.pop %v1374
    %v1377 = vmul.f32 %v1366, %v1375
    %v1378 = vmul.f32 %v1368, %v1376
    %v1379 = vmul.f32 %v1377, 0.95
    %v1380 = vmul.f32 %v1378, 0.95
    %v1381 = vmul.f32 %v709, 0.05
    %v1382 = vmul.f32 %v710, 0.05
    %v1383 = vadd.f32 %v1379, %v1381
    %v1384 = vadd.f32 %v1380, %v1382
    %1387 = vrot.lane.b32.xlu0 %v970, 32
    %v1388 = vpop.permute.xlu0 %1387
    %1389 = vrot.lane.b32.xlu0 %v975, 32
    %v1390 = vpop.permute.xlu0 %1389
    %v1394 = vsel %vm440, %v1383, 0
    %v1397 = vsel %vm440, %v1384, 0
    %1399 = vmatprep.subr.mxu0 0.0
    %1400 = vmatpush1.msra.mxu0 0.0
    %1401 = vmatprep.subr.mxu0 0.0
    %1402 = vmatpush1.msra.mxu0 0.0
    %1403 = vmatprep.subr.mxu0 0.0
    %1404 = vmatpush1.msra.mxu0 0.0
    %1405 = vmatprep.subr.mxu0 0.0
    %1406 = vmatpush1.msra.mxu0 0.0
    %1407 = vmatprep.subr.mxu0 0.0
    %1408 = vmatpush1.msra.mxu0 0.0
    %1409 = vmatprep.subr.mxu0 0.0
    %1410 = vmatpush1.msra.mxu0 0.0
    %1411 = vmatprep.subr.mxu0 0.0
    %1412 = vmatpush1.msra.mxu0 0.0
    %1413 = vmatprep.subr.mxu0 0.0
    %1414 = vmatpush1.msra.mxu0 0.0
    %1415 = vmatprep.subr.mxu0 0.0
    %1416 = vmatpush1.msra.mxu0 0.0
    %1417 = vmatprep.subr.mxu0 0.0
    %1418 = vmatpush1.msra.mxu0 0.0
    %1419 = vmatprep.subr.mxu0 0.0
    %1420 = vmatpush1.msra.mxu0 0.0
    %1421 = vmatprep.subr.mxu0 0.0
    %1422 = vmatpush1.msra.mxu0 0.0
    %1423 = vmatprep.subr.mxu0 0.0
    %1424 = vmatpush1.msra.mxu0 0.0
    %1425 = vmatprep.subr.mxu0 0.0
    %1426 = vmatpush1.msra.mxu0 0.0
    %1427 = vmatprep.subr.mxu0 0.0
    %1428 = vmatpush1.msra.mxu0 %v1228
    %1429 = vmatprep.subr.mxu0 0.0
    %1430 = vmatpush1.msra.mxu0 %v1226
    %1431 = vmatprep.subr.mxu0 0.0
    %1432 = vmatpush2.msra.mxu0 0.0
    %1433 = vmatprep.subr.mxu0 0.0
    %1434 = vmatpush2.msra.mxu0 0.0
    %1435 = vmatprep.subr.mxu0 0.0
    %1436 = vmatpush2.msra.mxu0 0.0
    %1437 = vmatprep.subr.mxu0 0.0
    %1438 = vmatpush2.msra.mxu0 0.0
    %1439 = vmatprep.subr.mxu0 0.0
    %1440 = vmatpush2.msra.mxu0 0.0
    %1441 = vmatprep.subr.mxu0 0.0
    %1442 = vmatpush2.msra.mxu0 0.0
    %1443 = vmatprep.subr.mxu0 0.0
    %1444 = vmatpush2.msra.mxu0 0.0
    %1445 = vmatprep.subr.mxu0 0.0
    %1446 = vmatpush2.msra.mxu0 0.0
    %1447 = vmatprep.subr.mxu0 0.0
    %1448 = vmatpush2.msra.mxu0 0.0
    %1449 = vmatprep.subr.mxu0 0.0
    %1450 = vmatpush2.msra.mxu0 0.0
    %1451 = vmatprep.subr.mxu0 0.0
    %1452 = vmatpush2.msra.mxu0 0.0
    %1453 = vmatprep.subr.mxu0 0.0
    %1454 = vmatpush2.msra.mxu0 0.0
    %1455 = vmatprep.subr.mxu0 0.0
    %1456 = vmatpush2.msra.mxu0 0.0
    %1457 = vmatprep.subr.mxu0 0.0
    %1458 = vmatpush2.msra.mxu0 0.0
    %1459 = vmatprep.subr.mxu0 0.0
    %1460 = vmatpush2.msra.mxu0 0.0
    %1461 = vmatprep.subr.mxu0 0.0
    %1462 = vmatpush2.msra.mxu0 0.0
    %1463 = vmatprep.mubr.f32.mxu0 0.0
    %1464 = vmatmul.mubr.f32.gmra.mxu0 %v1394
    %v1465 = vpop.f32.mrf.mxu0
    %v1466 = vadd.f32 %v1388, %v1465
    %v1467 = vpop.f32.mrf.mxu0
    %1468 = vmatprep.mubr.f32.mxu0 0.0
    %1469 = vmatmul.mubr.f32.gmra.mxu0 %v1397
    %v1470 = vpop.f32.mrf.mxu0
    %v1471 = vadd.f32 %v1390, %v1470
    %v1472 = vpop.f32.mrf.mxu0
    %1473 = vdwg.mxu0
    %vm1474 = vcmp.gt.f32.partialorder %v1466, 0.0
    %vm1475 = vcmp.gt.f32.partialorder %v1471, 0.0
    %v1476 = vmin.f32 %v1466, 0.0
    %v1477 = vmin.f32 %v1471, 0.0
    %v1478 = vmul.f32 %v1476, 1.442695
    %v1479 = vpow.pop %v1478
    %v1480 = vmul.f32 %v1477, 1.442695
    %v1481 = vpow.pop %v1480
    %v1482 = vsub.f32 %v1479, 1.0
    %v1483 = vsub.f32 %v1481, 1.0
    %v1484 = vsel %vm1474, %v1466, %v1482
    %v1485 = vsel %vm1475, %v1471, %v1483
    %v1486 = vld [vmem:[%s11] sm:$0xff]
    %v1487 = vld [vmem:[%s11 + $0x8] sm:$0xff]
    %v1488 = vld [vmem:[%s11 + $0x10] sm:$0xff]
    %v1489 = vld [vmem:[%s11 + $0x18] sm:$0xff]
    %v1490 = vld [vmem:[%s11 + $0x20] sm:$0xff]
    %v1491 = vld [vmem:[%s11 + $0x28] sm:$0xff]
    %v1492 = vld [vmem:[%s11 + $0x30] sm:$0xff]
    %v1493 = vld [vmem:[%s11 + $0x38] sm:$0xff]
    %v1494 = vld [vmem:[%s12] sm:$0x1]
    %v1495 = vld [vmem:[%s13] sm:$0x1]
    %v1497 = vsel %vm239, %v1484, 0
    %v1500 = vsel %vm239, %v1485, 0
    %1502 = vmatprep.subr.mxu0 0.0
    %1503 = vmatpush1.msra.mxu0 0.0
    %1504 = vmatprep.subr.mxu0 0.0
    %1505 = vmatpush1.msra.mxu0 0.0
    %1506 = vmatprep.subr.mxu0 0.0
    %1507 = vmatpush1.msra.mxu0 0.0
    %1508 = vmatprep.subr.mxu0 0.0
    %1509 = vmatpush1.msra.mxu0 0.0
    %1510 = vmatprep.subr.mxu0 0.0
    %1511 = vmatpush1.msra.mxu0 0.0
    %1512 = vmatprep.subr.mxu0 0.0
    %1513 = vmatpush1.msra.mxu0 0.0
    %1514 = vmatprep.subr.mxu0 0.0
    %1515 = vmatpush1.msra.mxu0 0.0
    %1516 = vmatprep.subr.mxu0 0.0
    %1517 = vmatpush1.msra.mxu0 0.0
    %1518 = vmatprep.subr.mxu0 0.0
    %1519 = vmatpush1.msra.mxu0 0.0
    %1520 = vmatprep.subr.mxu0 0.0
    %1521 = vmatpush1.msra.mxu0 0.0
    %1522 = vmatprep.subr.mxu0 0.0
    %1523 = vmatpush1.msra.mxu0 0.0
    %1524 = vmatprep.subr.mxu0 0.0
    %1525 = vmatpush1.msra.mxu0 0.0
    %1526 = vmatprep.subr.mxu0 0.0
    %1527 = vmatpush1.msra.mxu0 %v1493
    %1528 = vmatprep.subr.mxu0 0.0
    %1529 = vmatpush1.msra.mxu0 %v1492
    %1530 = vmatprep.subr.mxu0 0.0
    %1531 = vmatpush1.msra.mxu0 %v1491
    %1532 = vmatprep.subr.mxu0 0.0
    %1533 = vmatpush1.msra.mxu0 %v1490
    %1534 = vmatprep.subr.mxu0 0.0
    %1535 = vmatpush2.msra.mxu0 0.0
    %1536 = vmatprep.subr.mxu0 0.0
    %1537 = vmatpush2.msra.mxu0 0.0
    %1538 = vmatprep.subr.mxu0 0.0
    %1539 = vmatpush2.msra.mxu0 0.0
    %1540 = vmatprep.subr.mxu0 0.0
    %1541 = vmatpush2.msra.mxu0 0.0
    %1542 = vmatprep.subr.mxu0 0.0
    %1543 = vmatpush2.msra.mxu0 0.0
    %1544 = vmatprep.subr.mxu0 0.0
    %1545 = vmatpush2.msra.mxu0 0.0
    %1546 = vmatprep.subr.mxu0 0.0
    %1547 = vmatpush2.msra.mxu0 0.0
    %1548 = vmatprep.subr.mxu0 0.0
    %1549 = vmatpush2.msra.mxu0 0.0
    %1550 = vmatprep.subr.mxu0 0.0
    %1551 = vmatpush2.msra.mxu0 0.0
    %1552 = vmatprep.subr.mxu0 0.0
    %1553 = vmatpush2.msra.mxu0 0.0
    %1554 = vmatprep.subr.mxu0 0.0
    %1555 = vmatpush2.msra.mxu0 0.0
    %1556 = vmatprep.subr.mxu0 0.0
    %1557 = vmatpush2.msra.mxu0 0.0
    %1558 = vmatprep.subr.mxu0 0.0
    %1559 = vmatpush2.msra.mxu0 0.0
    %1560 = vmatprep.subr.mxu0 0.0
    %1561 = vmatpush2.msra.mxu0 0.0
    %1562 = vmatprep.subr.mxu0 0.0
    %1563 = vmatpush2.msra.mxu0 0.0
    %1564 = vmatprep.subr.mxu0 0.0
    %1565 = vmatpush2.msra.mxu0 0.0
    %1566 = vmatprep.mubr.f32.mxu0 0.0
    %1567 = vmatmul.mubr.f32.gmra.mxu0 %v1497
    %v1568 = vpop.f32.mrf.mxu0
    %v1569 = vadd.f32 0.0, %v1568
    %v1570 = vpop.f32.mrf.mxu0
    %1571 = vmatprep.mubr.f32.mxu0 0.0
    %1572 = vmatmul.mubr.f32.gmra.mxu0 %v1500
    %v1573 = vpop.f32.mrf.mxu0
    %v1574 = vadd.f32 0.0, %v1573
    %v1575 = vpop.f32.mrf.mxu0
    %1576 = vdwg.mxu0
    %v1578 = vsel %vm239, %v1222, 0
    %v1581 = vsel %vm239, %v1223, 0
    %1583 = vmatprep.subr.mxu0 0.0
    %1584 = vmatpush1.msra.mxu0 0.0
    %1585 = vmatprep.subr.mxu0 0.0
    %1586 = vmatpush1.msra.mxu0 0.0
    %1587 = vmatprep.subr.mxu0 0.0
    %1588 = vmatpush1.msra.mxu0 0.0
    %1589 = vmatprep.subr.mxu0 0.0
    %1590 = vmatpush1.msra.mxu0 0.0
    %1591 = vmatprep.subr.mxu0 0.0
    %1592 = vmatpush1.msra.mxu0 0.0
    %1593 = vmatprep.subr.mxu0 0.0
    %1594 = vmatpush1.msra.mxu0 0.0
    %1595 = vmatprep.subr.mxu0 0.0
    %1596 = vmatpush1.msra.mxu0 0.0
    %1597 = vmatprep.subr.mxu0 0.0
    %1598 = vmatpush1.msra.mxu0 0.0
    %1599 = vmatprep.subr.mxu0 0.0
    %1600 = vmatpush1.msra.mxu0 0.0
    %1601 = vmatprep.subr.mxu0 0.0
    %1602 = vmatpush1.msra.mxu0 0.0
    %1603 = vmatprep.subr.mxu0 0.0
    %1604 = vmatpush1.msra.mxu0 0.0
    %1605 = vmatprep.subr.mxu0 0.0
    %1606 = vmatpush1.msra.mxu0 0.0
    %1607 = vmatprep.subr.mxu0 0.0
    %1608 = vmatpush1.msra.mxu0 %v1489
    %1609 = vmatprep.subr.mxu0 0.0
    %1610 = vmatpush1.msra.mxu0 %v1488
    %1611 = vmatprep.subr.mxu0 0.0
    %1612 = vmatpush1.msra.mxu0 %v1487
    %1613 = vmatprep.subr.mxu0 0.0
    %1614 = vmatpush1.msra.mxu0 %v1486
    %1615 = vmatprep.subr.mxu0 0.0
    %1616 = vmatpush2.msra.mxu0 0.0
    %1617 = vmatprep.subr.mxu0 0.0
    %1618 = vmatpush2.msra.mxu0 0.0
    %1619 = vmatprep.subr.mxu0 0.0
    %1620 = vmatpush2.msra.mxu0 0.0
    %1621 = vmatprep.subr.mxu0 0.0
    %1622 = vmatpush2.msra.mxu0 0.0
    %1623 = vmatprep.subr.mxu0 0.0
    %1624 = vmatpush2.msra.mxu0 0.0
    %1625 = vmatprep.subr.mxu0 0.0
    %1626 = vmatpush2.msra.mxu0 0.0
    %1627 = vmatprep.subr.mxu0 0.0
    %1628 = vmatpush2.msra.mxu0 0.0
    %1629 = vmatprep.subr.mxu0 0.0
    %1630 = vmatpush2.msra.mxu0 0.0
    %1631 = vmatprep.subr.mxu0 0.0
    %1632 = vmatpush2.msra.mxu0 0.0
    %1633 = vmatprep.subr.mxu0 0.0
    %1634 = vmatpush2.msra.mxu0 0.0
    %1635 = vmatprep.subr.mxu0 0.0
    %1636 = vmatpush2.msra.mxu0 0.0
    %1637 = vmatprep.subr.mxu0 0.0
    %1638 = vmatpush2.msra.mxu0 0.0
    %1639 = vmatprep.subr.mxu0 0.0
    %1640 = vmatpush2.msra.mxu0 0.0
    %1641 = vmatprep.subr.mxu0 0.0
    %1642 = vmatpush2.msra.mxu0 0.0
    %1643 = vmatprep.subr.mxu0 0.0
    %1644 = vmatpush2.msra.mxu0 0.0
    %1645 = vmatprep.subr.mxu0 0.0
    %1646 = vmatpush2.msra.mxu0 0.0
    %1647 = vmatprep.mubr.f32.mxu0 0.0
    %1648 = vmatmul.mubr.f32.gmra.mxu0 %v1578
    %v1649 = vpop.f32.mrf.mxu0
    %v1650 = vadd.f32 %v1569, %v1649
    %v1651 = vpop.f32.mrf.mxu0
    %1652 = vmatprep.mubr.f32.mxu0 0.0
    %1653 = vmatmul.mubr.f32.gmra.mxu0 %v1581
    %v1654 = vpop.f32.mrf.mxu0
    %v1655 = vadd.f32 %v1574, %v1654
    %v1656 = vpop.f32.mrf.mxu0
    %1657 = vdwg.mxu0
    %v1659 = vsel %vm239, %v1494, 0
    %v1662 = vsel %vm239, %v1650, 0
    %v1665 = vsel %vm239, %v1655, 0
    %1667 = vmatprep.subr.mxu0 0.0
    %1668 = vmatpush1.xpose.msra.mxu0 0.0
    %1669 = vmatprep.subr.mxu0 0.0
    %1670 = vmatpush1.xpose.msra.mxu0 0.0
    %1671 = vmatprep.subr.mxu0 0.0
    %1672 = vmatpush1.xpose.msra.mxu0 0.0
    %1673 = vmatprep.subr.mxu0 0.0
    %1674 = vmatpush1.xpose.msra.mxu0 0.0
    %1675 = vmatprep.subr.mxu0 0.0
    %1676 = vmatpush1.xpose.msra.mxu0 0.0
    %1677 = vmatprep.subr.mxu0 0.0
    %1678 = vmatpush1.xpose.msra.mxu0 0.0
    %1679 = vmatprep.subr.mxu0 0.0
    %1680 = vmatpush1.xpose.msra.mxu0 0.0
    %1681 = vmatprep.subr.mxu0 0.0
    %1682 = vmatpush1.xpose.msra.mxu0 0.0
    %1683 = vmatprep.subr.mxu0 0.0
    %1684 = vmatpush1.xpose.msra.mxu0 0.0
    %1685 = vmatprep.subr.mxu0 0.0
    %1686 = vmatpush1.xpose.msra.mxu0 0.0
    %1687 = vmatprep.subr.mxu0 0.0
    %1688 = vmatpush1.xpose.msra.mxu0 0.0
    %1689 = vmatprep.subr.mxu0 0.0
    %1690 = vmatpush1.xpose.msra.mxu0 0.0
    %1691 = vmatprep.subr.mxu0 0.0
    %1692 = vmatpush1.xpose.msra.mxu0 0.0
    %1693 = vmatprep.subr.mxu0 0.0
    %1694 = vmatpush1.xpose.msra.mxu0 0.0
    %1695 = vmatprep.subr.mxu0 0.0
    %1696 = vmatpush1.xpose.msra.mxu0 %v1665
    %1697 = vmatprep.subr.mxu0 0.0
    %1698 = vmatpush1.xpose.msra.mxu0 %v1662
    %1699 = vmatprep.subr.mxu0 0.0
    %1700 = vmatpush2.xpose.msra.mxu0 0.0
    %1701 = vmatprep.subr.mxu0 0.0
    %1702 = vmatpush2.xpose.msra.mxu0 0.0
    %1703 = vmatprep.subr.mxu0 0.0
    %1704 = vmatpush2.xpose.msra.mxu0 0.0
    %1705 = vmatprep.subr.mxu0 0.0
    %1706 = vmatpush2.xpose.msra.mxu0 0.0
    %1707 = vmatprep.subr.mxu0 0.0
    %1708 = vmatpush2.xpose.msra.mxu0 0.0
    %1709 = vmatprep.subr.mxu0 0.0
    %1710 = vmatpush2.xpose.msra.mxu0 0.0
    %1711 = vmatprep.subr.mxu0 0.0
    %1712 = vmatpush2.xpose.msra.mxu0 0.0
    %1713 = vmatprep.subr.mxu0 0.0
    %1714 = vmatpush2.xpose.msra.mxu0 0.0
    %1715 = vmatprep.subr.mxu0 0.0
    %1716 = vmatpush2.xpose.msra.mxu0 0.0
    %1717 = vmatprep.subr.mxu0 0.0
    %1718 = vmatpush2.xpose.msra.mxu0 0.0
    %1719 = vmatprep.subr.mxu0 0.0
    %1720 = vmatpush2.xpose.msra.mxu0 0.0
    %1721 = vmatprep.subr.mxu0 0.0
    %1722 = vmatpush2.xpose.msra.mxu0 0.0
    %1723 = vmatprep.subr.mxu0 0.0
    %1724 = vmatpush2.xpose.msra.mxu0 0.0
    %1725 = vmatprep.subr.mxu0 0.0
    %1726 = vmatpush2.xpose.msra.mxu0 0.0
    %1727 = vmatprep.subr.mxu0 0.0
    %1728 = vmatpush2.xpose.msra.mxu0 0.0
    %1729 = vmatprep.subr.mxu0 0.0
    %1730 = vmatpush2.xpose.msra.mxu0 0.0
    %1731 = vmatprep.mubr.f32.mxu0 0.0
    %1732 = vmatmul.mubr.f32.gmra.mxu0 %v1659
    %v1733 = vpop.f32.mrf.mxu0
    %v1734 = vadd.f32 0.0, %v1733
    %v1735 = vpop.f32.mrf.mxu0
    %1736 = vdwg.mxu0
    %v1738 = vlaneseq
    %v1739 = vshrl.u32 %v1738, 7
    %v1740 = vsub.s32 0, %v1739
    %v1741 = vrot.slane %v1495, %v1740
    %v1743 = vmul.f32 %v1650, %v1741
    %v1744 = vmul.f32 %v1655, %v1741
    %v1745 = vsel %vm239, %v1743, 0.0
    %1746 = vadd.xlane.f32.xlu0 %v1745
    %v1747 = vpop.xlane.xlu0 %1746
    %v1748 = vsel %vm239, %v1744, 0.0
    %1749 = vadd.xlane.f32.xlu0 %v1748
    %v1750 = vpop.xlane.xlu0 %1749
    %s1751 = sld [smem:[#allocation7]]
    %v1752 = vstv %s1751
    %v1753 = vsel %vm122, %v1752, 0.0
    %v1754 = vsel %vm123, %v1752, 0.0
    %s1755 = sld [smem:[#allocation7 + $0x1]]
    %v1756 = vstv %s1755
    %v1757 = vsel %vm124, %v1756, %v1753
    %v1758 = vsel %vm125, %v1756, %v1754
    %s1759 = sld [smem:[#allocation7 + $0x2]]
    %v1760 = vstv %s1759
    %v1761 = vsel %vm126, %v1760, %v1757
    %v1762 = vsel %vm127, %v1760, %v1758
    %v1763 = vlaneseq
    %v1764 = vshrl.u32 %v1763, 7
    %v1765 = vsub.s32 0, %v1764
    %v1766 = vrot.slane %v1734, %v1765
    %v1767 = vadd.f32 %v1766, %v1747
    %v1768 = vadd.f32 %v1766, %v1750
    %v1769 = vadd.f32 %v1767, %v1761
    %v1770 = vadd.f32 %v1768, %v1762
    %vm1771 = vcmp.ge.f32.partialorder %v1769, 0.0
    %vm1772 = vcmp.ge.f32.partialorder %v1770, 0.0
    %v1773 = vmul.f32 %v1769, 0.2
    %v1774 = vmul.f32 %v1770, 0.2
    %v1775 = vsel %vm1771, %v1769, %v1773
    %v1776 = vsel %vm1772, %v1770, %v1774
    %v1777 = vsel %vm120, %v1775, -1e+09
    %v1778 = vsel %vm121, %v1776, -1e+09
    %v1779 = vsel %vm440, %v1777, -inf
    %1780 = vmax.xlane.f32.xlu0 %v1779
    %v1781 = vpop.xlane.xlu0 %1780
    %v1782 = vsel %vm440, %v1778, -inf
    %1783 = vmax.xlane.f32.xlu0 %v1782
    %v1784 = vpop.xlane.xlu0 %1783
    %v1785 = vsub.f32 %v1777, %v1781
    %v1786 = vsub.f32 %v1778, %v1784
    %v1787 = vmul.f32 %v1785, 1.442695
    %v1788 = vpow.pop %v1787
    %v1789 = vmul.f32 %v1786, 1.442695
    %v1790 = vpow.pop %v1789
    %v1791 = vsel %vm440, %v1788, 0.0
    %1792 = vadd.xlane.f32.xlu0 %v1791
    %v1793 = vpop.xlane.xlu0 %1792
    %v1794 = vsel %vm440, %v1790, 0.0
    %1795 = vadd.xlane.f32.xlu0 %v1794
    %v1796 = vpop.xlane.xlu0 %1795
    %v1797 = vrcp.pop %v1793
    %v1798 = vrcp.pop %v1796
    %v1799 = vmul.f32 %v1788, %v1797
    %v1800 = vmul.f32 %v1790, %v1798
    %1801 = vrot.lane.b32.xlu0 %v1650, 96
    %v1802 = vpop.permute.xlu0 %1801
    %1803 = vrot.lane.b32.xlu0 %v1655, 96
    %v1804 = vpop.permute.xlu0 %1803
    %v1808 = vsel %vm440, %v1799, 0
    %v1811 = vsel %vm440, %v1800, 0
    %1813 = vmatprep.subr.mxu0 0.0
    %1814 = vmatpush1.msra.mxu0 0.0
    %1815 = vmatprep.subr.mxu0 0.0
    %1816 = vmatpush1.msra.mxu0 0.0
    %1817 = vmatprep.subr.mxu0 0.0
    %1818 = vmatpush1.msra.mxu0 0.0
    %1819 = vmatprep.subr.mxu0 0.0
    %1820 = vmatpush1.msra.mxu0 0.0
    %1821 = vmatprep.subr.mxu0 0.0
    %1822 = vmatpush1.msra.mxu0 0.0
    %1823 = vmatprep.subr.mxu0 0.0
    %1824 = vmatpush1.msra.mxu0 0.0
    %1825 = vmatprep.subr.mxu0 0.0
    %1826 = vmatpush1.msra.mxu0 0.0
    %1827 = vmatprep.subr.mxu0 0.0
    %1828 = vmatpush1.msra.mxu0 0.0
    %1829 = vmatprep.subr.mxu0 0.0
    %1830 = vmatpush1.msra.mxu0 0.0
    %1831 = vmatprep.subr.mxu0 0.0
    %1832 = vmatpush1.msra.mxu0 0.0
    %1833 = vmatprep.subr.mxu0 0.0
    %1834 = vmatpush1.msra.mxu0 0.0
    %1835 = vmatprep.subr.mxu0 0.0
    %1836 = vmatpush1.msra.mxu0 0.0
    %1837 = vmatprep.subr.mxu0 0.0
    %1838 = vmatpush1.msra.mxu0 0.0
    %1839 = vmatprep.subr.mxu0 0.0
    %1840 = vmatpush1.msra.mxu0 0.0
    %1841 = vmatprep.subr.mxu0 0.0
    %1842 = vmatpush1.msra.mxu0 %v1655
    %1843 = vmatprep.subr.mxu0 0.0
    %1844 = vmatpush1.msra.mxu0 %v1650
    %1845 = vmatprep.subr.mxu0 0.0
    %1846 = vmatpush2.msra.mxu0 0.0
    %1847 = vmatprep.subr.mxu0 0.0
    %1848 = vmatpush2.msra.mxu0 0.0
    %1849 = vmatprep.subr.mxu0 0.0
    %1850 = vmatpush2.msra.mxu0 0.0
    %1851 = vmatprep.subr.mxu0 0.0
    %1852 = vmatpush2.msra.mxu0 0.0
    %1853 = vmatprep.subr.mxu0 0.0
    %1854 = vmatpush2.msra.mxu0 0.0
    %1855 = vmatprep.subr.mxu0 0.0
    %1856 = vmatpush2.msra.mxu0 0.0
    %1857 = vmatprep.subr.mxu0 0.0
    %1858 = vmatpush2.msra.mxu0 0.0
    %1859 = vmatprep.subr.mxu0 0.0
    %1860 = vmatpush2.msra.mxu0 0.0
    %1861 = vmatprep.subr.mxu0 0.0
    %1862 = vmatpush2.msra.mxu0 0.0
    %1863 = vmatprep.subr.mxu0 0.0
    %1864 = vmatpush2.msra.mxu0 0.0
    %1865 = vmatprep.subr.mxu0 0.0
    %1866 = vmatpush2.msra.mxu0 0.0
    %1867 = vmatprep.subr.mxu0 0.0
    %1868 = vmatpush2.msra.mxu0 0.0
    %1869 = vmatprep.subr.mxu0 0.0
    %1870 = vmatpush2.msra.mxu0 0.0
    %1871 = vmatprep.subr.mxu0 0.0
    %1872 = vmatpush2.msra.mxu0 0.0
    %1873 = vmatprep.subr.mxu0 0.0
    %1874 = vmatpush2.msra.mxu0 0.0
    %1875 = vmatprep.subr.mxu0 0.0
    %1876 = vmatpush2.msra.mxu0 0.0
    %1877 = vmatprep.mubr.f32.mxu0 0.0
    %1878 = vmatmul.mubr.f32.gmra.mxu0 %v1808
    %v1879 = vpop.f32.mrf.mxu0
    %v1880 = vadd.f32 %v1802, %v1879
    %v1881 = vpop.f32.mrf.mxu0
    %1882 = vmatprep.mubr.f32.mxu0 0.0
    %1883 = vmatmul.mubr.f32.gmra.mxu0 %v1811
    %v1884 = vpop.f32.mrf.mxu0
    %v1885 = vadd.f32 %v1804, %v1884
    %v1886 = vpop.f32.mrf.mxu0
    %1887 = vdwg.mxu0
    %s1888 = sld [smem:[#allocation8 + $0x1]]
    %s1889 = sld [smem:[#allocation8 + $0x3]]
    %s1890 = sld [smem:[#allocation8 + $0x8]]
    %s1891 = sld [smem:[#allocation8 + $0x9]]
    %s1892 = sld [smem:[#allocation8 + $0xa]]
    %s1893 = sld [smem:[#allocation8 + $0xb]]
    %s1894 = sld [smem:[#allocation8 + $0xc]]
    %s1895 = smul.f32 %s1888, %s1890
    %s1896 = sadd.f32 %s1895, %s1891
    %s1897 = smul.f32 %s1896, %s1892
    %s1898 = sadd.f32 %s1897, %s1893
    %v1899 = vld [vmem:[%s14] sm:$0x1]
    %v1900 = vld [vmem:[%s14 + $0x1] sm:$0x1]
    %v1901 = vld [vmem:[%s14 + $0x2] sm:$0x1]
    %v1902 = vstv %s1889
    %v1903 = vmul.f32 %v1902, %v1899
    %v1904 = vadd.f32 %v1903, %v1900
    %v1905 = vmax.f32 %v1904, 0.0
    %v1906 = vmul.f32 %v1905, %v1901
    %vm1907 = vcmask 122880
    %v1908 = vsel %vm1907, %v1906, 0.0
    %1909 = vadd.xlane.f32.xlu0 %v1908
    %v1910 = vpop.xlane.xlu0 %1909
    %s1911 = sadd.f32 %s1898, %s1894
    %v1912 = vstv %s1911
    %v1913 = vadd.f32 %v1910, %v1912
    %v1914 = vmul.f32 %v1880, %v221
    %v1915 = vmul.f32 %v1885, %v226
    %v1916 = vlaneseq
    %v1917 = vshrl.u32 %v1916, 7
    %v1918 = vsub.s32 0, %v1917
    %v1919 = vrot.slane %v1913, %v1918
    %v1920 = vadd.f32 %v1914, %v1919
    %v1921 = vadd.f32 %v1915, %v1919
    %v1922 = vmul.f32 %v1880, %v1880
    %v1923 = vmul.f32 %v1885, %v1885
    %v1924 = vsel %vm239, %v1922, 0.0
    %1925 = vadd.xlane.f32.xlu0 %v1924
    %v1926 = vpop.xlane.xlu0 %1925
    %v1927 = vsel %vm239, %v1923, 0.0
    %1928 = vadd.xlane.f32.xlu0 %v1927
    %v1929 = vpop.xlane.xlu0 %1928
    %v1930 = vmax.f32 %v1926, 1e-24
    %v1931 = vmax.f32 %v1929, 1e-24
    %v1932 = vrsqrt.pop %v1930
    %v1933 = vrsqrt.pop %v1931
    %v1934 = vmul.f32 %v1880, %v1932
    %v1935 = vmul.f32 %v1885, %v1933
    %v1936 = vmul.f32 %v1920, %v1920
    %v1937 = vmul.f32 %v1921, %v1921
    %v1938 = vsel %vm239, %v1936, 0.0
    %1939 = vadd.xlane.f32.xlu0 %v1938
    %v1940 = vpop.xlane.xlu0 %1939
    %v1941 = vsel %vm239, %v1937, 0.0
    %1942 = vadd.xlane.f32.xlu0 %v1941
    %v1943 = vpop.xlane.xlu0 %1942
    %v1944 = vmax.f32 %v1940, 1e-24
    %v1945 = vmax.f32 %v1943, 1e-24
    %v1946 = vrsqrt.pop %v1944
    %v1947 = vrsqrt.pop %v1945
    %v1948 = vmul.f32 %v1920, %v1946
    %v1949 = vmul.f32 %v1921, %v1947
    %v1950 = vld [vmem:[%s15] sm:$0xff]
    %v1951 = vld [vmem:[%s15 + $0x8] sm:$0xff]
    %v1952 = vld [vmem:[%s15 + $0x10] sm:$0xff]
    %v1953 = vld [vmem:[%s15 + $0x18] sm:$0xff]
    %v1954 = vld [vmem:[%s15 + $0x20] sm:$0xff]
    %v1955 = vld [vmem:[%s15 + $0x28] sm:$0xff]
    %v1956 = vld [vmem:[%s15 + $0x30] sm:$0xff]
    %v1957 = vld [vmem:[%s15 + $0x38] sm:$0xff]
    %v1959 = vsel %vm239, %v1948, 0
    %v1962 = vsel %vm239, %v1949, 0
    %1964 = vmatprep.subr.mxu0 0.0
    %1965 = vmatpush1.msra.mxu0 0.0
    %1966 = vmatprep.subr.mxu0 0.0
    %1967 = vmatpush1.msra.mxu0 0.0
    %1968 = vmatprep.subr.mxu0 0.0
    %1969 = vmatpush1.msra.mxu0 0.0
    %1970 = vmatprep.subr.mxu0 0.0
    %1971 = vmatpush1.msra.mxu0 0.0
    %1972 = vmatprep.subr.mxu0 0.0
    %1973 = vmatpush1.msra.mxu0 0.0
    %1974 = vmatprep.subr.mxu0 0.0
    %1975 = vmatpush1.msra.mxu0 0.0
    %1976 = vmatprep.subr.mxu0 0.0
    %1977 = vmatpush1.msra.mxu0 0.0
    %1978 = vmatprep.subr.mxu0 0.0
    %1979 = vmatpush1.msra.mxu0 0.0
    %1980 = vmatprep.subr.mxu0 0.0
    %1981 = vmatpush1.msra.mxu0 0.0
    %1982 = vmatprep.subr.mxu0 0.0
    %1983 = vmatpush1.msra.mxu0 0.0
    %1984 = vmatprep.subr.mxu0 0.0
    %1985 = vmatpush1.msra.mxu0 0.0
    %1986 = vmatprep.subr.mxu0 0.0
    %1987 = vmatpush1.msra.mxu0 0.0
    %1988 = vmatprep.subr.mxu0 0.0
    %1989 = vmatpush1.msra.mxu0 %v1957
    %1990 = vmatprep.subr.mxu0 0.0
    %1991 = vmatpush1.msra.mxu0 %v1956
    %1992 = vmatprep.subr.mxu0 0.0
    %1993 = vmatpush1.msra.mxu0 %v1955
    %1994 = vmatprep.subr.mxu0 0.0
    %1995 = vmatpush1.msra.mxu0 %v1954
    %1996 = vmatprep.subr.mxu0 0.0
    %1997 = vmatpush2.msra.mxu0 0.0
    %1998 = vmatprep.subr.mxu0 0.0
    %1999 = vmatpush2.msra.mxu0 0.0
    %2000 = vmatprep.subr.mxu0 0.0
    %2001 = vmatpush2.msra.mxu0 0.0
    %2002 = vmatprep.subr.mxu0 0.0
    %2003 = vmatpush2.msra.mxu0 0.0
    %2004 = vmatprep.subr.mxu0 0.0
    %2005 = vmatpush2.msra.mxu0 0.0
    %2006 = vmatprep.subr.mxu0 0.0
    %2007 = vmatpush2.msra.mxu0 0.0
    %2008 = vmatprep.subr.mxu0 0.0
    %2009 = vmatpush2.msra.mxu0 0.0
    %2010 = vmatprep.subr.mxu0 0.0
    %2011 = vmatpush2.msra.mxu0 0.0
    %2012 = vmatprep.subr.mxu0 0.0
    %2013 = vmatpush2.msra.mxu0 0.0
    %2014 = vmatprep.subr.mxu0 0.0
    %2015 = vmatpush2.msra.mxu0 0.0
    %2016 = vmatprep.subr.mxu0 0.0
    %2017 = vmatpush2.msra.mxu0 0.0
    %2018 = vmatprep.subr.mxu0 0.0
    %2019 = vmatpush2.msra.mxu0 0.0
    %2020 = vmatprep.subr.mxu0 0.0
    %2021 = vmatpush2.msra.mxu0 0.0
    %2022 = vmatprep.subr.mxu0 0.0
    %2023 = vmatpush2.msra.mxu0 0.0
    %2024 = vmatprep.subr.mxu0 0.0
    %2025 = vmatpush2.msra.mxu0 0.0
    %2026 = vmatprep.subr.mxu0 0.0
    %2027 = vmatpush2.msra.mxu0 0.0
    %2028 = vmatprep.mubr.f32.mxu0 0.0
    %2029 = vmatmul.mubr.f32.gmra.mxu0 %v1959
    %v2030 = vpop.f32.mrf.mxu0
    %v2031 = vadd.f32 0.0, %v2030
    %v2032 = vpop.f32.mrf.mxu0
    %2033 = vmatprep.mubr.f32.mxu0 0.0
    %2034 = vmatmul.mubr.f32.gmra.mxu0 %v1962
    %v2035 = vpop.f32.mrf.mxu0
    %v2036 = vadd.f32 0.0, %v2035
    %v2037 = vpop.f32.mrf.mxu0
    %2038 = vdwg.mxu0
    %v2040 = vsel %vm239, %v1934, 0
    %v2043 = vsel %vm239, %v1935, 0
    %2045 = vmatprep.subr.mxu0 0.0
    %2046 = vmatpush1.msra.mxu0 0.0
    %2047 = vmatprep.subr.mxu0 0.0
    %2048 = vmatpush1.msra.mxu0 0.0
    %2049 = vmatprep.subr.mxu0 0.0
    %2050 = vmatpush1.msra.mxu0 0.0
    %2051 = vmatprep.subr.mxu0 0.0
    %2052 = vmatpush1.msra.mxu0 0.0
    %2053 = vmatprep.subr.mxu0 0.0
    %2054 = vmatpush1.msra.mxu0 0.0
    %2055 = vmatprep.subr.mxu0 0.0
    %2056 = vmatpush1.msra.mxu0 0.0
    %2057 = vmatprep.subr.mxu0 0.0
    %2058 = vmatpush1.msra.mxu0 0.0
    %2059 = vmatprep.subr.mxu0 0.0
    %2060 = vmatpush1.msra.mxu0 0.0
    %2061 = vmatprep.subr.mxu0 0.0
    %2062 = vmatpush1.msra.mxu0 0.0
    %2063 = vmatprep.subr.mxu0 0.0
    %2064 = vmatpush1.msra.mxu0 0.0
    %2065 = vmatprep.subr.mxu0 0.0
    %2066 = vmatpush1.msra.mxu0 0.0
    %2067 = vmatprep.subr.mxu0 0.0
    %2068 = vmatpush1.msra.mxu0 0.0
    %2069 = vmatprep.subr.mxu0 0.0
    %2070 = vmatpush1.msra.mxu0 %v1953
    %2071 = vmatprep.subr.mxu0 0.0
    %2072 = vmatpush1.msra.mxu0 %v1952
    %2073 = vmatprep.subr.mxu0 0.0
    %2074 = vmatpush1.msra.mxu0 %v1951
    %2075 = vmatprep.subr.mxu0 0.0
    %2076 = vmatpush1.msra.mxu0 %v1950
    %2077 = vmatprep.subr.mxu0 0.0
    %2078 = vmatpush2.msra.mxu0 0.0
    %2079 = vmatprep.subr.mxu0 0.0
    %2080 = vmatpush2.msra.mxu0 0.0
    %2081 = vmatprep.subr.mxu0 0.0
    %2082 = vmatpush2.msra.mxu0 0.0
    %2083 = vmatprep.subr.mxu0 0.0
    %2084 = vmatpush2.msra.mxu0 0.0
    %2085 = vmatprep.subr.mxu0 0.0
    %2086 = vmatpush2.msra.mxu0 0.0
    %2087 = vmatprep.subr.mxu0 0.0
    %2088 = vmatpush2.msra.mxu0 0.0
    %2089 = vmatprep.subr.mxu0 0.0
    %2090 = vmatpush2.msra.mxu0 0.0
    %2091 = vmatprep.subr.mxu0 0.0
    %2092 = vmatpush2.msra.mxu0 0.0
    %2093 = vmatprep.subr.mxu0 0.0
    %2094 = vmatpush2.msra.mxu0 0.0
    %2095 = vmatprep.subr.mxu0 0.0
    %2096 = vmatpush2.msra.mxu0 0.0
    %2097 = vmatprep.subr.mxu0 0.0
    %2098 = vmatpush2.msra.mxu0 0.0
    %2099 = vmatprep.subr.mxu0 0.0
    %2100 = vmatpush2.msra.mxu0 0.0
    %2101 = vmatprep.subr.mxu0 0.0
    %2102 = vmatpush2.msra.mxu0 0.0
    %2103 = vmatprep.subr.mxu0 0.0
    %2104 = vmatpush2.msra.mxu0 0.0
    %2105 = vmatprep.subr.mxu0 0.0
    %2106 = vmatpush2.msra.mxu0 0.0
    %2107 = vmatprep.subr.mxu0 0.0
    %2108 = vmatpush2.msra.mxu0 0.0
    %2109 = vmatprep.mubr.f32.mxu0 0.0
    %2110 = vmatmul.mubr.f32.gmra.mxu0 %v2040
    %v2111 = vpop.f32.mrf.mxu0
    %v2112 = vadd.f32 %v2031, %v2111
    %v2113 = vpop.f32.mrf.mxu0
    %2114 = vmatprep.mubr.f32.mxu0 0.0
    %2115 = vmatmul.mubr.f32.gmra.mxu0 %v2043
    %v2116 = vpop.f32.mrf.mxu0
    %v2117 = vadd.f32 %v2036, %v2116
    %v2118 = vpop.f32.mrf.mxu0
    %2119 = vdwg.mxu0
    %2120 = vst.msk [vmem:[#allocation10] sm:$0xff] %vm239, %v2112
    %2121 = vst.msk [vmem:[#allocation10 + $0x8] sm:$0xff] %vm239, %v2117
    // Predicated region
    $region98: #{hetcan_forward.1} parent=1 // pred_check
      _
    $region99: #{hetcan_forward.1} parent=1 // pred_check_branch
      %2123 = sbr.rel (0) target = $region101
    $region100: #{hetcan_forward.1} parent=1 // pred_region
      %s2125 = ssub.s32 256, 256
      %2126 = vsyncadd [#allocation3], %s2125
      %s2127 = sshll.u32 [#allocation10], 4
      %s2128 = int_to_ptr.vmem [resolvable:$true] %s2127
      %2133 = dma.vmem_to_hbm [thread:$0]  %s2128, 256, %s20, [#allocation3], 128, 128, 8
    $region101: #{hetcan_forward.1} parent=1 // pred_fallthru
      _
    // Predicated region
    $region102: #{hetcan_forward.1} parent=1 // pred_check
      _
    $region103: #{hetcan_forward.1} parent=1 // pred_check_branch
      %2135 = sbr.rel (0) target = $region105
    $region104: #{hetcan_forward.1} parent=1 // pred_region
      %2136 = dma.done [#allocation3], 256
    $region105: #{hetcan_forward.1} parent=1 // pred_fallthru
      _
    %2137 = vsyncpa [#allocation3], 1
    %2138 = vsyncpa [#allocation4], 1
    %2139 = vsyncpa [#allocation6], 1
    %2140 = vsyncpa [#allocation9], 1

</llo_original>
